<compile_context>
chip_gen: v7x
topology: tpu7x:2x2x1
jax: 0.10.0
libtpu: 0.0.40
codegen_flags: <defaults>
</compile_context>

<pallas_src>
import functools

import jax
import jax.numpy as jnp
from jax.experimental import pallas as pl
from jax.experimental.pallas import tpu as pltpu


def _mha_kernel(num_heads, head_dim,
                q_ref, k_ref, v_ref,
                wq_ref, bq_ref,
                wk_ref, bk_ref,
                wv_ref, bv_ref,
                wo_ref, bo_ref,
                o_ref,
                kproj_ref, vproj_ref):
    H, Dh = num_heads, head_dim
    cdt = jnp.bfloat16
    i = pl.program_id(1)          # query-tile index ("arbitrary" axis)

    # ---- K/V projections: once per batch, cached in persistent VMEM scratch.
    @pl.when(i == 0)
    def _():
        k = k_ref[0]              # (S, E) bf16
        v = v_ref[0]              # (S, E) bf16
        K = jnp.dot(k, wk_ref[...], preferred_element_type=jnp.float32) + bk_ref[...]
        V = jnp.dot(v, wv_ref[...], preferred_element_type=jnp.float32) + bv_ref[...]
        kproj_ref[...] = K.astype(cdt)
        vproj_ref[...] = V.astype(cdt)

    # ---- Q projection for this query tile (softmax scale already folded into
    #      wq/bq at parameter-prep time).
    q = q_ref[0]                  # (TQ, E) bf16
    Q = jnp.dot(q, wq_ref[...], preferred_element_type=jnp.float32) + bq_ref[...]
    Qc = Q.astype(cdt)            # (TQ, E)
    Kc = kproj_ref[...]           # (S,  E) bf16 (cached)
    Vc = vproj_ref[...]           # (S,  E) bf16 (cached)

    TQ = Qc.shape[0]
    E_pad = wo_ref.shape[1]

    # ---- Per-head attention from static lane-slice views (no head scratch),
    #      combine_heads + out_linear fused as a sum over Wo row-blocks.
    acc = jnp.zeros((TQ, E_pad), jnp.float32)
    for h in range(H):
        lo = h * Dh
        qh = Qc[:, lo:lo + Dh]    # (TQ, Dh)
        kh = Kc[:, lo:lo + Dh]    # (S,  Dh)
        vh = Vc[:, lo:lo + Dh]    # (S,  Dh)

        # scores = qh @ kh^T (contraction on last dims; no materialized K^T).
        s = jax.lax.dot_general(qh, kh, (((1,), (1,)), ((), ())),
                                preferred_element_type=jnp.float32)   # (TQ, S)

        # Numerically-stable softmax (f32) with deferred normalization.
        s = s - jnp.max(s, axis=-1, keepdims=True)
        p = jnp.exp(s)
        l = jnp.sum(p, axis=-1, keepdims=True)                        # (TQ, 1)

        ctx_h = jnp.dot(p.astype(cdt), vh,
                        preferred_element_type=jnp.float32)           # (TQ, Dh)
        ctx_h = ctx_h * pl.reciprocal(l, approx=True)

        # combine_heads + out_linear fused (exact):
        #   concat_h(ctx_h) @ Wo == sum_h ctx_h @ Wo[h*Dh:(h+1)*Dh, :]
        acc = acc + jnp.dot(ctx_h.astype(cdt), wo_ref[lo:lo + Dh, :],
                            preferred_element_type=jnp.float32)

    out = acc + bo_ref[...]                                            # (TQ, E_pad)
    o_ref[0] = out.astype(o_ref.dtype)          # full-128-lane (unmasked) store


def multi_head_attention(q, k, v, params, *, num_heads, q_block=256):
    """q, k, v: (B, S, E) float32.  params: transposed weights (in,out) + biases."""
    B, S, E = q.shape
    assert E % num_heads == 0
    Dh = E // num_heads

    # Query-row tile: full S for small sequences, otherwise up to 256 rows
    # (bigger tiles amortize the ~0.35 us per-grid-step overhead).
    TQ = S if S <= q_block else q_block
    assert S % TQ == 0, "seq_len must be divisible by the query tile"
    NQ = S // TQ

    # Pad the output-projection lane dim up to a multiple of 128 so the final
    # store is lane-dense (unmasked vst); wrapper slices the padding off.
    E_pad = ((E + 127) // 128) * 128

    cdt = jnp.bfloat16
    scale = 1.0 / (float(Dh) ** 0.5)

    qc, kc, vc = q.astype(cdt), k.astype(cdt), v.astype(cdt)

    # Fold the softmax scale into the Q projection (exact).
    wq = (params["wq_t"] * scale).astype(cdt)
    bq = (params["bq"] * scale).reshape(1, E).astype(jnp.float32)
    wk = params["wk_t"].astype(cdt)
    bk = params["bk"].reshape(1, E).astype(jnp.float32)
    wv = params["wv_t"].astype(cdt)
    bv = params["bv"].reshape(1, E).astype(jnp.float32)

    if E_pad == E:
        wo = params["wo_t"].astype(cdt)
        bo = params["bo"].reshape(1, E).astype(jnp.float32)
    else:
        wo = jnp.zeros((E, E_pad), cdt).at[:, :E].set(params["wo_t"].astype(cdt))
        bo = jnp.zeros((1, E_pad), jnp.float32).at[:, :E].set(
            params["bo"].reshape(1, E).astype(jnp.float32))

    q_spec = pl.BlockSpec((1, TQ, E), lambda b, i: (b, i, 0))
    kv_spec = pl.BlockSpec((1, S, E), lambda b, i: (b, 0, 0))
    w_spec = pl.BlockSpec((E, E), lambda b, i: (0, 0))
    wo_spec = pl.BlockSpec((E, E_pad), lambda b, i: (0, 0))
    b_spec = pl.BlockSpec((1, E), lambda b, i: (0, 0))
    bo_spec = pl.BlockSpec((1, E_pad), lambda b, i: (0, 0))
    o_spec = pl.BlockSpec((1, TQ, E_pad), lambda b, i: (b, i, 0))

    cost = pl.CostEstimate(
        flops=int(6 * B * S * E * E + 2 * B * S * E * E_pad + 4 * B * S * S * E),
        transcendentals=int(B * num_heads * S * S),
        bytes_accessed=int((3 * B * S * E) * 2 + (3 * E * E + E * E_pad) * 2
                           + (3 * E + E_pad) * 4 + B * S * E_pad * 4),
    )

    kernel = functools.partial(_mha_kernel, num_heads, Dh)

    out = pl.pallas_call(
        kernel,
        out_shape=jax.ShapeDtypeStruct((B, S, E_pad), q.dtype),
        grid_spec=pltpu.PrefetchScalarGridSpec(
            num_scalar_prefetch=0,
            grid=(B, NQ),
            in_specs=[
                q_spec, kv_spec, kv_spec,      # q, k, v
                w_spec, b_spec,                # Wq (scale-folded), bq
                w_spec, b_spec,                # Wk, bk
                w_spec, b_spec,                # Wv, bv
                wo_spec, bo_spec,              # Wo (lane-padded), bo
            ],
            out_specs=o_spec,
            scratch_shapes=[
                pltpu.VMEM((S, E), cdt),       # cached projected K (per batch)
                pltpu.VMEM((S, E), cdt),       # cached projected V (per batch)
            ],
        ),
        compiler_params=pltpu.CompilerParams(
            # q-tile axis must be "arbitrary" so the per-batch K/V projection
            # cache in scratch is valid across query tiles.
            dimension_semantics=("parallel", "arbitrary"),
            # Explicit ceiling: above the scoped defaults, safely below v7x's
            # 64 MiB physical VMEM (raise toward ~100 MiB on v5e/v6e).
            vmem_limit_bytes=48 * 1024 * 1024,
        ),
        cost_estimate=cost,
    )(qc, kc, vc, wq, bq, wk, bk, wv, bv, wo, bo)

    return out if E_pad == E else out[..., :E]


def _reference_mha(q, k, v, params, *, num_heads):
    """Pure-JAX f32 reference mirroring the PyTorch module (eval mode, mask=None)."""
    B, S, E = q.shape
    Dh = E // num_heads

    def lin(x, w_t, b):
        return x @ w_t + b

    Q = lin(q, params["wq_t"], params["bq"])
    K = lin(k, params["wk_t"], params["bk"])
    V = lin(v, params["wv_t"], params["bv"])

    def split(x):  # (B,S,E) -> (B,H,S,Dh)
        return x.reshape(B, S, num_heads, Dh).transpose(0, 2, 1, 3)

    Qh, Kh, Vh = split(Q), split(K), split(V)
    scores = jnp.einsum("bhqd,bhkd->bhqk", Qh, Kh) / jnp.sqrt(jnp.float32(Dh))
    attn = jax.nn.softmax(scores, axis=-1)
    ctx = jnp.einsum("bhqk,bhkd->bhqd", attn, Vh)
    ctx = ctx.transpose(0, 2, 1, 3).reshape(B, S, E)
    return lin(ctx, params["wo_t"], params["bo"])


if __name__ == "__main__":
    # Small, module-consistent shapes.
    batch, seq_len, embed_dim, num_heads = 2, 8, 32, 4

    key = jax.random.PRNGKey(0)
    ks = jax.random.split(key, 11)

    def init_w(k):  # stored transposed: (in, out)
        return jax.random.normal(k, (embed_dim, embed_dim), jnp.float32) * 0.05

    def init_b(k):
        return jax.random.normal(k, (embed_dim,), jnp.float32) * 0.05

    params = {
        "wq_t": init_w(ks[0]), "bq": init_b(ks[1]),
        "wk_t": init_w(ks[2]), "bk": init_b(ks[3]),
        "wv_t": init_w(ks[4]), "bv": init_b(ks[5]),
        "wo_t": init_w(ks[6]), "bo": init_b(ks[7]),
    }

    q = jax.random.normal(ks[8], (batch, seq_len, embed_dim), jnp.float32)
    k = jax.random.normal(ks[9], (batch, seq_len, embed_dim), jnp.float32)
    v = jax.random.normal(ks[10], (batch, seq_len, embed_dim), jnp.float32)

    out = multi_head_attention(q, k, v, params, num_heads=num_heads)
    out = jax.block_until_ready(out)

    ref = _reference_mha(q, k, v, params, num_heads=num_heads)
    assert out.shape == (batch, seq_len, embed_dim)
    # bf16 matmul operands (f32 accumulation) + approx reciprocal -> looser tol.
    assert jnp.allclose(out, ref, atol=2e-2, rtol=2e-2), (
        f"max abs err {jnp.max(jnp.abs(out - ref))}")

    print("KERNEL_OK")
</pallas_src>

<mosaic_0001>
module attributes {stable_mosaic.version = 11 : i64} {
  func.func @_mha_kernel(%arg0: i32, %arg1: i32, %arg2: memref<1x8x32xbf16, #tpu.memory_space<vmem>>, %arg3: memref<1x8x32xbf16, #tpu.memory_space<vmem>>, %arg4: memref<1x8x32xbf16, #tpu.memory_space<vmem>>, %arg5: memref<32x32xbf16, #tpu.memory_space<vmem>>, %arg6: memref<1x32xf32, #tpu.memory_space<vmem>>, %arg7: memref<32x32xbf16, #tpu.memory_space<vmem>>, %arg8: memref<1x32xf32, #tpu.memory_space<vmem>>, %arg9: memref<32x32xbf16, #tpu.memory_space<vmem>>, %arg10: memref<1x32xf32, #tpu.memory_space<vmem>>, %arg11: memref<32x128xbf16, #tpu.memory_space<vmem>>, %arg12: memref<1x128xf32, #tpu.memory_space<vmem>>, %arg13: memref<1x8x128xf32, #tpu.memory_space<vmem>>, %arg14: memref<8x32xbf16, #tpu.memory_space<vmem>>, %arg15: memref<8x32xbf16, #tpu.memory_space<vmem>>) attributes {dimension_semantics = [#tpu.dimension_semantics<parallel>, #tpu.dimension_semantics<arbitrary>], iteration_bounds = array<i64: 2, 1>, scalar_prefetch = 0 : i64, scratch_operands = 2 : i64, tpu.core_type = #tpu.core_type<tc>, window_params = [{transform_indices = @transform_0, window_bounds = array<i64: 1, 8, 32>}, {transform_indices = @transform_1, window_bounds = array<i64: 1, 8, 32>}, {transform_indices = @transform_2, window_bounds = array<i64: 1, 8, 32>}, {pipeline_mode = #tpu.pipeline_mode<synchronous>, transform_indices = @transform_3, window_bounds = array<i64: 32, 32>}, {pipeline_mode = #tpu.pipeline_mode<synchronous>, transform_indices = @transform_4, window_bounds = array<i64: 1, 32>}, {pipeline_mode = #tpu.pipeline_mode<synchronous>, transform_indices = @transform_5, window_bounds = array<i64: 32, 32>}, {pipeline_mode = #tpu.pipeline_mode<synchronous>, transform_indices = @transform_6, window_bounds = array<i64: 1, 32>}, {pipeline_mode = #tpu.pipeline_mode<synchronous>, transform_indices = @transform_7, window_bounds = array<i64: 32, 32>}, {pipeline_mode = #tpu.pipeline_mode<synchronous>, transform_indices = @transform_8, window_bounds = array<i64: 1, 32>}, {pipeline_mode = #tpu.pipeline_mode<synchronous>, transform_indices = @transform_9, window_bounds = array<i64: 32, 128>}, {pipeline_mode = #tpu.pipeline_mode<synchronous>, transform_indices = @transform_10, window_bounds = array<i64: 1, 128>}, {transform_indices = @transform_11, window_bounds = array<i64: 1, 8, 128>}]} {
    %c0_i32 = arith.constant 0 : i32
    %0 = arith.cmpi eq, %arg1, %c0_i32 : i32
    %1 = arith.extui %0 : i1 to i32
    %c0_i32_0 = arith.constant 0 : i32
    %2 = arith.cmpi ne, %1, %c0_i32_0 : i32
    scf.if %2 {
      %c0_42 = arith.constant 0 : index
      %c0_43 = arith.constant 0 : index
      %c0_44 = arith.constant 0 : index
      %100 = vector.load %arg3[%c0_42, %c0_43, %c0_44] : memref<1x8x32xbf16, #tpu.memory_space<vmem>>, vector<1x8x32xbf16>
      %101 = vector.shape_cast %100 : vector<1x8x32xbf16> to vector<8x32xbf16>
      %c0_45 = arith.constant 0 : index
      %c0_46 = arith.constant 0 : index
      %c0_47 = arith.constant 0 : index
      %102 = vector.load %arg4[%c0_45, %c0_46, %c0_47] : memref<1x8x32xbf16, #tpu.memory_space<vmem>>, vector<1x8x32xbf16>
      %103 = vector.shape_cast %102 : vector<1x8x32xbf16> to vector<8x32xbf16>
      %c0_48 = arith.constant 0 : index
      %c0_49 = arith.constant 0 : index
      %104 = vector.load %arg7[%c0_48, %c0_49] : memref<32x32xbf16, #tpu.memory_space<vmem>>, vector<32x32xbf16>
      %cst_50 = arith.constant dense<0.000000e+00> : vector<8x32xf32>
      %105 = tpu.matmul %101, %104, %cst_50 {dimension_numbers = #tpu.dot_dimension_numbers<[1], [0], [0], [1], [0, 0, 1, 1], [], []>} : vector<8x32xbf16>, vector<32x32xbf16>, vector<8x32xf32> -> vector<8x32xf32>
      %c0_51 = arith.constant 0 : index
      %c0_52 = arith.constant 0 : index
      %106 = vector.load %arg8[%c0_51, %c0_52] : memref<1x32xf32, #tpu.memory_space<vmem>>, vector<1x32xf32>
      %107 = vector.broadcast %106 : vector<1x32xf32> to vector<8x32xf32>
      %108 = arith.addf %105, %107 : vector<8x32xf32>
      %c0_53 = arith.constant 0 : index
      %c0_54 = arith.constant 0 : index
      %109 = vector.load %arg9[%c0_53, %c0_54] : memref<32x32xbf16, #tpu.memory_space<vmem>>, vector<32x32xbf16>
      %cst_55 = arith.constant dense<0.000000e+00> : vector<8x32xf32>
      %110 = tpu.matmul %103, %109, %cst_55 {dimension_numbers = #tpu.dot_dimension_numbers<[1], [0], [0], [1], [0, 0, 1, 1], [], []>} : vector<8x32xbf16>, vector<32x32xbf16>, vector<8x32xf32> -> vector<8x32xf32>
      %c0_56 = arith.constant 0 : index
      %c0_57 = arith.constant 0 : index
      %111 = vector.load %arg10[%c0_56, %c0_57] : memref<1x32xf32, #tpu.memory_space<vmem>>, vector<1x32xf32>
      %112 = vector.broadcast %111 : vector<1x32xf32> to vector<8x32xf32>
      %113 = arith.addf %110, %112 : vector<8x32xf32>
      %114 = arith.truncf %108 : vector<8x32xf32> to vector<8x32xbf16>
      %c0_58 = arith.constant 0 : index
      %c0_59 = arith.constant 0 : index
      %115 = vector.load %arg14[%c0_58, %c0_59] : memref<8x32xbf16, #tpu.memory_space<vmem>>, vector<8x32xbf16>
      tpu.vector_store %arg14[%c0_58, %c0_59], %114 {strides = array<i32>} : memref<8x32xbf16, #tpu.memory_space<vmem>>, vector<8x32xbf16>,
      %116 = arith.truncf %113 : vector<8x32xf32> to vector<8x32xbf16>
      %c0_60 = arith.constant 0 : index
      %c0_61 = arith.constant 0 : index
      %117 = vector.load %arg15[%c0_60, %c0_61] : memref<8x32xbf16, #tpu.memory_space<vmem>>, vector<8x32xbf16>
      tpu.vector_store %arg15[%c0_60, %c0_61], %116 {strides = array<i32>} : memref<8x32xbf16, #tpu.memory_space<vmem>>, vector<8x32xbf16>,
    } else {
    }
    %c0 = arith.constant 0 : index
    %c0_1 = arith.constant 0 : index
    %c0_2 = arith.constant 0 : index
    %3 = vector.load %arg2[%c0, %c0_1, %c0_2] : memref<1x8x32xbf16, #tpu.memory_space<vmem>>, vector<1x8x32xbf16>
    %4 = vector.shape_cast %3 : vector<1x8x32xbf16> to vector<8x32xbf16>
    %c0_3 = arith.constant 0 : index
    %c0_4 = arith.constant 0 : index
    %5 = vector.load %arg5[%c0_3, %c0_4] : memref<32x32xbf16, #tpu.memory_space<vmem>>, vector<32x32xbf16>
    %cst = arith.constant dense<0.000000e+00> : vector<8x32xf32>
    %6 = tpu.matmul %4, %5, %cst {dimension_numbers = #tpu.dot_dimension_numbers<[1], [0], [0], [1], [0, 0, 1, 1], [], []>} : vector<8x32xbf16>, vector<32x32xbf16>, vector<8x32xf32> -> vector<8x32xf32>
    %c0_5 = arith.constant 0 : index
    %c0_6 = arith.constant 0 : index
    %7 = vector.load %arg6[%c0_5, %c0_6] : memref<1x32xf32, #tpu.memory_space<vmem>>, vector<1x32xf32>
    %8 = vector.broadcast %7 : vector<1x32xf32> to vector<8x32xf32>
    %9 = arith.addf %6, %8 : vector<8x32xf32>
    %10 = arith.truncf %9 : vector<8x32xf32> to vector<8x32xbf16>
    %c0_7 = arith.constant 0 : index
    %c0_8 = arith.constant 0 : index
    %11 = vector.load %arg14[%c0_7, %c0_8] : memref<8x32xbf16, #tpu.memory_space<vmem>>, vector<8x32xbf16>
    %c0_9 = arith.constant 0 : index
    %c0_10 = arith.constant 0 : index
    %12 = vector.load %arg15[%c0_9, %c0_10] : memref<8x32xbf16, #tpu.memory_space<vmem>>, vector<8x32xbf16>
    %cst_11 = arith.constant 0.000000e+00 : f32
    %13 = vector.broadcast %cst_11 : f32 to vector<8x128xf32>
    %14 = vector.extract_strided_slice %10 {offsets = [0, 0], sizes = [8, 8], strides = [1, 1]} : vector<8x32xbf16> to vector<8x8xbf16>
    %15 = vector.extract_strided_slice %11 {offsets = [0, 0], sizes = [8, 8], strides = [1, 1]} : vector<8x32xbf16> to vector<8x8xbf16>
    %16 = vector.extract_strided_slice %12 {offsets = [0, 0], sizes = [8, 8], strides = [1, 1]} : vector<8x32xbf16> to vector<8x8xbf16>
    %cst_12 = arith.constant dense<0.000000e+00> : vector<8x8xf32>
    %17 = tpu.matmul %14, %15, %cst_12 {dimension_numbers = #tpu.dot_dimension_numbers<[1], [1], [0], [0], [0, 0, 1, 0], [], []>} : vector<8x8xbf16>, vector<8x8xbf16>, vector<8x8xf32> -> vector<8x8xf32>
    %cst_13 = arith.constant dense<0xFF800000> : vector<8xf32>
    %18 = vector.multi_reduction <maximumf>, %17, %cst_13 [1] : vector<8x8xf32> to vector<8xf32>
    %19 = vector.shape_cast %18 : vector<8xf32> to vector<8x1xf32>
    %20 = vector.broadcast %19 : vector<8x1xf32> to vector<8x8xf32>
    %21 = arith.subf %17, %20 : vector<8x8xf32>
    %22 = math.exp %21 : vector<8x8xf32>
    %cst_14 = arith.constant dense<0.000000e+00> : vector<8xf32>
    %23 = vector.multi_reduction <add>, %22, %cst_14 [1] : vector<8x8xf32> to vector<8xf32>
    %24 = vector.shape_cast %23 : vector<8xf32> to vector<8x1xf32>
    %25 = arith.truncf %22 : vector<8x8xf32> to vector<8x8xbf16>
    %cst_15 = arith.constant dense<0.000000e+00> : vector<8x8xf32>
    %26 = tpu.matmul %25, %16, %cst_15 {dimension_numbers = #tpu.dot_dimension_numbers<[1], [0], [0], [1], [0, 0, 1, 1], [], []>} : vector<8x8xbf16>, vector<8x8xbf16>, vector<8x8xf32> -> vector<8x8xf32>
    %27 = tpu.reciprocal %24 {approx = true} : vector<8x1xf32> -> vector<8x1xf32>
    %28 = vector.broadcast %27 : vector<8x1xf32> to vector<8x8xf32>
    %29 = arith.mulf %26, %28 : vector<8x8xf32>
    %30 = arith.truncf %29 : vector<8x8xf32> to vector<8x8xbf16>
    %c0_16 = arith.constant 0 : index
    %c0_17 = arith.constant 0 : index
    %31 = vector.load %arg11[%c0_16, %c0_17] : memref<32x128xbf16, #tpu.memory_space<vmem>>, vector<8x128xbf16>
    %cst_18 = arith.constant dense<0.000000e+00> : vector<8x128xf32>
    %32 = tpu.matmul %30, %31, %cst_18 {dimension_numbers = #tpu.dot_dimension_numbers<[1], [0], [0], [1], [0, 0, 1, 1], [], []>} : vector<8x8xbf16>, vector<8x128xbf16>, vector<8x128xf32> -> vector<8x128xf32>
    %33 = arith.addf %13, %32 : vector<8x128xf32>
    %34 = vector.extract_strided_slice %10 {offsets = [0, 8], sizes = [8, 8], strides = [1, 1]} : vector<8x32xbf16> to vector<8x8xbf16>
    %35 = vector.extract_strided_slice %11 {offsets = [0, 8], sizes = [8, 8], strides = [1, 1]} : vector<8x32xbf16> to vector<8x8xbf16>
    %36 = vector.extract_strided_slice %12 {offsets = [0, 8], sizes = [8, 8], strides = [1, 1]} : vector<8x32xbf16> to vector<8x8xbf16>
    %cst_19 = arith.constant dense<0.000000e+00> : vector<8x8xf32>
    %37 = tpu.matmul %34, %35, %cst_19 {dimension_numbers = #tpu.dot_dimension_numbers<[1], [1], [0], [0], [0, 0, 1, 0], [], []>} : vector<8x8xbf16>, vector<8x8xbf16>, vector<8x8xf32> -> vector<8x8xf32>
    %cst_20 = arith.constant dense<0xFF800000> : vector<8xf32>
    %38 = vector.multi_reduction <maximumf>, %37, %cst_20 [1] : vector<8x8xf32> to vector<8xf32>
    %39 = vector.shape_cast %38 : vector<8xf32> to vector<8x1xf32>
    %40 = vector.broadcast %39 : vector<8x1xf32> to vector<8x8xf32>
    %41 = arith.subf %37, %40 : vector<8x8xf32>
    %42 = math.exp %41 : vector<8x8xf32>
    %cst_21 = arith.constant dense<0.000000e+00> : vector<8xf32>
    %43 = vector.multi_reduction <add>, %42, %cst_21 [1] : vector<8x8xf32> to vector<8xf32>
    %44 = vector.shape_cast %43 : vector<8xf32> to vector<8x1xf32>
    %45 = arith.truncf %42 : vector<8x8xf32> to vector<8x8xbf16>
    %cst_22 = arith.constant dense<0.000000e+00> : vector<8x8xf32>
    %46 = tpu.matmul %45, %36, %cst_22 {dimension_numbers = #tpu.dot_dimension_numbers<[1], [0], [0], [1], [0, 0, 1, 1], [], []>} : vector<8x8xbf16>, vector<8x8xbf16>, vector<8x8xf32> -> vector<8x8xf32>
    %47 = tpu.reciprocal %44 {approx = true} : vector<8x1xf32> -> vector<8x1xf32>
    %48 = vector.broadcast %47 : vector<8x1xf32> to vector<8x8xf32>
    %49 = arith.mulf %46, %48 : vector<8x8xf32>
    %50 = arith.truncf %49 : vector<8x8xf32> to vector<8x8xbf16>
    %c8 = arith.constant 8 : index
    %c0_23 = arith.constant 0 : index
    %51 = vector.load %arg11[%c8, %c0_23] : memref<32x128xbf16, #tpu.memory_space<vmem>>, vector<8x128xbf16>
    %cst_24 = arith.constant dense<0.000000e+00> : vector<8x128xf32>
    %52 = tpu.matmul %50, %51, %cst_24 {dimension_numbers = #tpu.dot_dimension_numbers<[1], [0], [0], [1], [0, 0, 1, 1], [], []>} : vector<8x8xbf16>, vector<8x128xbf16>, vector<8x128xf32> -> vector<8x128xf32>
    %53 = arith.addf %33, %52 : vector<8x128xf32>
    %54 = vector.extract_strided_slice %10 {offsets = [0, 16], sizes = [8, 8], strides = [1, 1]} : vector<8x32xbf16> to vector<8x8xbf16>
    %55 = vector.extract_strided_slice %11 {offsets = [0, 16], sizes = [8, 8], strides = [1, 1]} : vector<8x32xbf16> to vector<8x8xbf16>
    %56 = vector.extract_strided_slice %12 {offsets = [0, 16], sizes = [8, 8], strides = [1, 1]} : vector<8x32xbf16> to vector<8x8xbf16>
    %cst_25 = arith.constant dense<0.000000e+00> : vector<8x8xf32>
    %57 = tpu.matmul %54, %55, %cst_25 {dimension_numbers = #tpu.dot_dimension_numbers<[1], [1], [0], [0], [0, 0, 1, 0], [], []>} : vector<8x8xbf16>, vector<8x8xbf16>, vector<8x8xf32> -> vector<8x8xf32>
    %cst_26 = arith.constant dense<0xFF800000> : vector<8xf32>
    %58 = vector.multi_reduction <maximumf>, %57, %cst_26 [1] : vector<8x8xf32> to vector<8xf32>
    %59 = vector.shape_cast %58 : vector<8xf32> to vector<8x1xf32>
    %60 = vector.broadcast %59 : vector<8x1xf32> to vector<8x8xf32>
    %61 = arith.subf %57, %60 : vector<8x8xf32>
    %62 = math.exp %61 : vector<8x8xf32>
    %cst_27 = arith.constant dense<0.000000e+00> : vector<8xf32>
    %63 = vector.multi_reduction <add>, %62, %cst_27 [1] : vector<8x8xf32> to vector<8xf32>
    %64 = vector.shape_cast %63 : vector<8xf32> to vector<8x1xf32>
    %65 = arith.truncf %62 : vector<8x8xf32> to vector<8x8xbf16>
    %cst_28 = arith.constant dense<0.000000e+00> : vector<8x8xf32>
    %66 = tpu.matmul %65, %56, %cst_28 {dimension_numbers = #tpu.dot_dimension_numbers<[1], [0], [0], [1], [0, 0, 1, 1], [], []>} : vector<8x8xbf16>, vector<8x8xbf16>, vector<8x8xf32> -> vector<8x8xf32>
    %67 = tpu.reciprocal %64 {approx = true} : vector<8x1xf32> -> vector<8x1xf32>
    %68 = vector.broadcast %67 : vector<8x1xf32> to vector<8x8xf32>
    %69 = arith.mulf %66, %68 : vector<8x8xf32>
    %70 = arith.truncf %69 : vector<8x8xf32> to vector<8x8xbf16>
    %c16 = arith.constant 16 : index
    %c0_29 = arith.constant 0 : index
    %71 = vector.load %arg11[%c16, %c0_29] : memref<32x128xbf16, #tpu.memory_space<vmem>>, vector<8x128xbf16>
    %cst_30 = arith.constant dense<0.000000e+00> : vector<8x128xf32>
    %72 = tpu.matmul %70, %71, %cst_30 {dimension_numbers = #tpu.dot_dimension_numbers<[1], [0], [0], [1], [0, 0, 1, 1], [], []>} : vector<8x8xbf16>, vector<8x128xbf16>, vector<8x128xf32> -> vector<8x128xf32>
    %73 = arith.addf %53, %72 : vector<8x128xf32>
    %74 = vector.extract_strided_slice %10 {offsets = [0, 24], sizes = [8, 8], strides = [1, 1]} : vector<8x32xbf16> to vector<8x8xbf16>
    %75 = vector.extract_strided_slice %11 {offsets = [0, 24], sizes = [8, 8], strides = [1, 1]} : vector<8x32xbf16> to vector<8x8xbf16>
    %76 = vector.extract_strided_slice %12 {offsets = [0, 24], sizes = [8, 8], strides = [1, 1]} : vector<8x32xbf16> to vector<8x8xbf16>
    %cst_31 = arith.constant dense<0.000000e+00> : vector<8x8xf32>
    %77 = tpu.matmul %74, %75, %cst_31 {dimension_numbers = #tpu.dot_dimension_numbers<[1], [1], [0], [0], [0, 0, 1, 0], [], []>} : vector<8x8xbf16>, vector<8x8xbf16>, vector<8x8xf32> -> vector<8x8xf32>
    %cst_32 = arith.constant dense<0xFF800000> : vector<8xf32>
    %78 = vector.multi_reduction <maximumf>, %77, %cst_32 [1] : vector<8x8xf32> to vector<8xf32>
    %79 = vector.shape_cast %78 : vector<8xf32> to vector<8x1xf32>
    %80 = vector.broadcast %79 : vector<8x1xf32> to vector<8x8xf32>
    %81 = arith.subf %77, %80 : vector<8x8xf32>
    %82 = math.exp %81 : vector<8x8xf32>
    %cst_33 = arith.constant dense<0.000000e+00> : vector<8xf32>
    %83 = vector.multi_reduction <add>, %82, %cst_33 [1] : vector<8x8xf32> to vector<8xf32>
    %84 = vector.shape_cast %83 : vector<8xf32> to vector<8x1xf32>
    %85 = arith.truncf %82 : vector<8x8xf32> to vector<8x8xbf16>
    %cst_34 = arith.constant dense<0.000000e+00> : vector<8x8xf32>
    %86 = tpu.matmul %85, %76, %cst_34 {dimension_numbers = #tpu.dot_dimension_numbers<[1], [0], [0], [1], [0, 0, 1, 1], [], []>} : vector<8x8xbf16>, vector<8x8xbf16>, vector<8x8xf32> -> vector<8x8xf32>
    %87 = tpu.reciprocal %84 {approx = true} : vector<8x1xf32> -> vector<8x1xf32>
    %88 = vector.broadcast %87 : vector<8x1xf32> to vector<8x8xf32>
    %89 = arith.mulf %86, %88 : vector<8x8xf32>
    %90 = arith.truncf %89 : vector<8x8xf32> to vector<8x8xbf16>
    %c24 = arith.constant 24 : index
    %c0_35 = arith.constant 0 : index
    %91 = vector.load %arg11[%c24, %c0_35] : memref<32x128xbf16, #tpu.memory_space<vmem>>, vector<8x128xbf16>
    %cst_36 = arith.constant dense<0.000000e+00> : vector<8x128xf32>
    %92 = tpu.matmul %90, %91, %cst_36 {dimension_numbers = #tpu.dot_dimension_numbers<[1], [0], [0], [1], [0, 0, 1, 1], [], []>} : vector<8x8xbf16>, vector<8x128xbf16>, vector<8x128xf32> -> vector<8x128xf32>
    %93 = arith.addf %73, %92 : vector<8x128xf32>
    %c0_37 = arith.constant 0 : index
    %c0_38 = arith.constant 0 : index
    %94 = vector.load %arg12[%c0_37, %c0_38] : memref<1x128xf32, #tpu.memory_space<vmem>>, vector<1x128xf32>
    %95 = vector.broadcast %94 : vector<1x128xf32> to vector<8x128xf32>
    %96 = arith.addf %93, %95 : vector<8x128xf32>
    %c0_39 = arith.constant 0 : index
    %c0_40 = arith.constant 0 : index
    %c0_41 = arith.constant 0 : index
    %97 = vector.load %arg13[%c0_39, %c0_40, %c0_41] : memref<1x8x128xf32, #tpu.memory_space<vmem>>, vector<1x8x128xf32>
    %98 = vector.shape_cast %97 : vector<1x8x128xf32> to vector<8x128xf32>
    %99 = vector.shape_cast %96 : vector<8x128xf32> to vector<1x8x128xf32>
    tpu.vector_store %arg13[%c0_39, %c0_40, %c0_41], %99 {strides = array<i32>} : memref<1x8x128xf32, #tpu.memory_space<vmem>>, vector<1x8x128xf32>,
    return
  }
  func.func @transform_0(%arg0: i32, %arg1: i32) -> (i32, i32, i32) {
    %c0_i32 = arith.constant 0 : i32
    %c0_i32_0 = arith.constant 0 : i32
    return %arg0, %arg1, %c0_i32 : i32, i32, i32
  }
  func.func @transform_1(%arg0: i32, %arg1: i32) -> (i32, i32, i32) {
    %c0_i32 = arith.constant 0 : i32
    %c0_i32_0 = arith.constant 0 : i32
    %c0_i32_1 = arith.constant 0 : i32
    return %arg0, %c0_i32, %c0_i32_0 : i32, i32, i32
  }
  func.func @transform_2(%arg0: i32, %arg1: i32) -> (i32, i32, i32) {
    %c0_i32 = arith.constant 0 : i32
    %c0_i32_0 = arith.constant 0 : i32
    %c0_i32_1 = arith.constant 0 : i32
    return %arg0, %c0_i32, %c0_i32_0 : i32, i32, i32
  }
  func.func @transform_3(%arg0: i32, %arg1: i32) -> (i32, i32) {
    %c0_i32 = arith.constant 0 : i32
    %c0_i32_0 = arith.constant 0 : i32
    %c0_i32_1 = arith.constant 0 : i32
    return %c0_i32, %c0_i32_0 : i32, i32
  }
  func.func @transform_4(%arg0: i32, %arg1: i32) -> (i32, i32) {
    %c0_i32 = arith.constant 0 : i32
    %c0_i32_0 = arith.constant 0 : i32
    %c0_i32_1 = arith.constant 0 : i32
    return %c0_i32, %c0_i32_0 : i32, i32
  }
  func.func @transform_5(%arg0: i32, %arg1: i32) -> (i32, i32) {
    %c0_i32 = arith.constant 0 : i32
    %c0_i32_0 = arith.constant 0 : i32
    %c0_i32_1 = arith.constant 0 : i32
    return %c0_i32, %c0_i32_0 : i32, i32
  }
  func.func @transform_6(%arg0: i32, %arg1: i32) -> (i32, i32) {
    %c0_i32 = arith.constant 0 : i32
    %c0_i32_0 = arith.constant 0 : i32
    %c0_i32_1 = arith.constant 0 : i32
    return %c0_i32, %c0_i32_0 : i32, i32
  }
  func.func @transform_7(%arg0: i32, %arg1: i32) -> (i32, i32) {
    %c0_i32 = arith.constant 0 : i32
    %c0_i32_0 = arith.constant 0 : i32
    %c0_i32_1 = arith.constant 0 : i32
    return %c0_i32, %c0_i32_0 : i32, i32
  }
  func.func @transform_8(%arg0: i32, %arg1: i32) -> (i32, i32) {
    %c0_i32 = arith.constant 0 : i32
    %c0_i32_0 = arith.constant 0 : i32
    %c0_i32_1 = arith.constant 0 : i32
    return %c0_i32, %c0_i32_0 : i32, i32
  }
  func.func @transform_9(%arg0: i32, %arg1: i32) -> (i32, i32) {
    %c0_i32 = arith.constant 0 : i32
    %c0_i32_0 = arith.constant 0 : i32
    %c0_i32_1 = arith.constant 0 : i32
    return %c0_i32, %c0_i32_0 : i32, i32
  }
  func.func @transform_10(%arg0: i32, %arg1: i32) -> (i32, i32) {
    %c0_i32 = arith.constant 0 : i32
    %c0_i32_0 = arith.constant 0 : i32
    %c0_i32_1 = arith.constant 0 : i32
    return %c0_i32, %c0_i32_0 : i32, i32
  }
  func.func @transform_11(%arg0: i32, %arg1: i32) -> (i32, i32, i32) {
    %c0_i32 = arith.constant 0 : i32
    %c0_i32_0 = arith.constant 0 : i32
    return %arg0, %arg1, %c0_i32 : i32, i32, i32
  }
}

</mosaic_0001>

<llo_original>
// kernel: tpu_custom_call.1
$region0: #{tpu_custom_call.1}
  #allocation0 [shape = 'u32[]', space=smem, size = 0x4, offset = 0x4, fixed_abs, tag = 'smem constant byte address 0x4 - core index']
  #allocation1 [shape = 'u32[144,128]{1,0:T(1,128)}', space=vmem, size = 0x12000, scoped, tag = 'internal scratch']
  #allocation2 [shape = 'bf16[8,32]{1,0:T(8,128)(2,1)}', space=vmem, size = 0x800, scoped, tag = 'scratch operand']
  #allocation3 [shape = 'bf16[8,32]{1,0:T(8,128)(2,1)}', space=vmem, size = 0x800, scoped, tag = 'scratch operand']
  %s0 = inlined_call_operand.hbm [shape: bf16[2,8,32], index: 0, kind: input, shape index: {}]
  %s1 = inlined_call_operand.hbm [shape: bf16[2,8,32], index: 1, kind: input, shape index: {}]
  %s2 = inlined_call_operand.hbm [shape: bf16[2,8,32], index: 2, kind: input, shape index: {}]
  %s3 = inlined_call_operand.hbm [shape: bf16[32,32], index: 3, kind: input, shape index: {}]
  %s4 = inlined_call_operand.vmem [shape: f32[1,32], index: 4, kind: input, shape index: {}]
  %s5 = inlined_call_operand.vmem [shape: bf16[32,32], index: 5, kind: input, shape index: {}]
  %s6 = inlined_call_operand.vmem [shape: f32[1,32], index: 6, kind: input, shape index: {}]
  %s7 = inlined_call_operand.hbm [shape: bf16[32,32], index: 7, kind: input, shape index: {}]
  %s8 = inlined_call_operand.hbm [shape: f32[1,32], index: 8, kind: input, shape index: {}]
  %s9 = inlined_call_operand.vmem [shape: bf16[32,128], index: 9, kind: input, shape index: {}]
  %s10 = inlined_call_operand.vmem [shape: f32[1,128], index: 10, kind: input, shape index: {}]
  %s11 = inlined_call_operand.hbm [shape: f32[2,8,128], index: 11, kind: output, shape index: {}]
  %s12 = sld [smem:[#allocation0]]
  $region105: #{tpu_custom_call.1} parent=0
    _
  %s14 = ssub.s32 1, %s12
  %s15 = scalar_select 0, %s14, %s12
  $region1: #{tpu_custom_call.1} parent=0
    #allocation4 [shape = 'u8[4096]{0}', space=vmem, size = 0x1000, scoped, tag = 'input window, operand 0']
    #allocation5 [shape = 's32[2]{0}', space=sflag, size = 0x8, scoped, tag = 'scoped memory for tpu_custom_call.1']
    #allocation6 [shape = 's32[2]{0}', space=sflag, size = 0x8, scoped, tag = 'scoped memory for tpu_custom_call.1']
    #allocation7 [shape = 'u8[4096]{0}', space=vmem, size = 0x1000, scoped, tag = 'input window, operand 1']
    #allocation8 [shape = 's32[2]{0}', space=sflag, size = 0x8, scoped, tag = 'scoped memory for tpu_custom_call.1']
    #allocation9 [shape = 'u8[4096]{0}', space=vmem, size = 0x1000, scoped, tag = 'input window, operand 2']
    #allocation10 [shape = 'u8[8192]{0}', space=vmem, size = 0x2000, scoped, tag = 'input window, operand 3, single buffered']
    #allocation11 [shape = 's32[1]{0}', space=sflag, size = 0x4, scoped, tag = 'scoped memory for tpu_custom_call.1']
    #allocation12 [shape = 'u8[8192]{0}', space=vmem, size = 0x2000, scoped, tag = 'input window, operand 7, single buffered']
    #allocation13 [shape = 'u8[512]{0}', space=vmem, size = 0x400, scoped, tag = 'input window, operand 8, single buffered']
    #allocation14 [shape = 's32[1]{0}', space=sflag, size = 0x4, scoped, tag = 'scoped memory for tpu_custom_call.1']
    #allocation15 [shape = 'u8[8192]{0}', space=vmem, size = 0x2000, scoped, tag = 'output window, operand 0']
    %16 = vsyncpa [#allocation5], 0
    %s17 = scalar_lea.sflag [#allocation5], 1
    %18 = vsyncpa %s17, 0
    %19 = vsyncpa [#allocation8], 0
    %s20 = scalar_lea.sflag [#allocation8], 1
    %21 = vsyncpa %s20, 0
    %22 = vsyncpa [#allocation11], 0
    %23 = vsyncpa [#allocation14], 0
    %24 = vsyncpa [#allocation6], 0
    %s25 = scalar_lea.sflag [#allocation6], 1
    %26 = vsyncpa %s25, 0
    loop: start=0, step=1, limit=4
    $region2: #{tpu_custom_call.1} parent=1 // loop_pre_header
      _
    $region3: #{tpu_custom_call.1} parent=1 // loop_header
      %s28 = sphi 0, %s32
      %p29 = scmp.ge.s32.totalorder %s28, 4
      %s35 = sphi 0, %s47
      %s36 = sphi 0, %s43
      %s37 = sphi 0, %s35
      %s38 = sphi 0, %s36
      %s39 = sphi 0, %s37
      %s40 = sphi 0, %s38
      %s52 = sphi 0, %s54
      %s55 = sphi 0, %s52
      %s56 = sphi 0, %s55
      %s72 = sphi 0, %s56
      %s78 = sphi 0, %s80
      %s81 = sphi 0, %s78
      %s82 = sphi 0, %s81
      %s98 = sphi 0, %s82
      %s104 = sphi 0, %s106
      %s107 = sphi 0, %s104
      %s108 = sphi 0, %s107
      %s124 = sphi 0, %s108
      %s128 = sphi 0, %s128
      %s130 = sphi 0, %s128
      %s131 = sphi 0, %s130
      %s145 = sphi 0, %s131
      %s149 = sphi 0, %s149
      %s151 = sphi 0, %s149
      %s152 = sphi 0, %s151
      %s166 = sphi 0, %s152
      %s170 = sphi 0, %s170
      %s172 = sphi 0, %s170
      %s173 = sphi 0, %s172
      %s187 = sphi 0, %s173
      %s191 = sphi 0, %s191
      %s193 = sphi 0, %s191
      %s194 = sphi 0, %s193
      %s208 = sphi 0, %s194
      %s212 = sphi 0, %s212
      %s214 = sphi 0, %s212
      %s215 = sphi 0, %s214
      %s229 = sphi 0, %s215
      %s233 = sphi 0, %s233
      %s235 = sphi 0, %s233
      %s236 = sphi 0, %s235
      %s250 = sphi 0, %s236
      %s254 = sphi 0, %s254
      %s256 = sphi 0, %s254
      %s257 = sphi 0, %s256
      %s271 = sphi 0, %s257
      %s275 = sphi 0, %s275
      %s277 = sphi 0, %s275
      %s278 = sphi 0, %s277
      %s292 = sphi 0, %s278
      %s300 = sphi 0, %s302
      %s303 = sphi 0, %s300
      %s304 = sphi 0, %s303
      %s320 = sphi 0, %s304
    $region4: #{tpu_custom_call.1} parent=1 // loop_header_branch
      %31 = sbr.rel (%p29) target = $region8
    $region5: #{tpu_custom_call.1} parent=1 // loop_body
      %s33 = ssub.s32 %s28, 1
      %s34 = ssub.s32 %s28, 2
      %s41 = sadd.s32 1, %s36
      %p42 = scmp.ge.s32.totalorder %s41, 1
      %s43 = scalar_select %p42, 0, %s41
      %s44 = sadd.s32 1, %s35
      %s45 = scalar_select %p42, %s44, %s35
      %p46 = scmp.ge.s32.totalorder %s45, 2
      %s47 = scalar_select %p46, 0, %s45
      %s48 = ssub.s32 %s35, %s47
      %s49 = ssub.s32 %s36, %s43
      %s50 = sor.u32 %s48, %s49
      %p51 = scmp.eq.s32.totalorder %s50, 0
      %s53 = sadd.s32 %s52, 1
      %s54 = scalar_select %p51, %s52, %s53
      %p57 = pneg %p51
      %p58 = scmp.eq.s32.totalorder %s28, 1
      %p59 = por %p57, %p58
      %p60 = scmp.ne.s32.totalorder %s52, %s55
      %p61 = scmp.eq.s32.totalorder %s28, 0
      %p62 = por %p60, %p61
      %p63 = scmp.ne.s32.totalorder %s52, %s55
      %p64 = scmp.eq.s32.totalorder %s33, 1
      %p65 = por %p63, %p64
      %p66 = scmp.ne.s32.totalorder %s55, %s56
      %p67 = scmp.eq.s32.totalorder %s33, 0
      %p68 = por %p66, %p67
      %p69 = scmp.ne.s32.totalorder %s55, %s56
      %p70 = scmp.eq.s32.totalorder %s34, 1
      %p71 = por %p69, %p70
      %p73 = scmp.ne.s32.totalorder %s56, %s72
      %p74 = scmp.eq.s32.totalorder %s34, 0
      %p75 = por %p73, %p74
      %s76 = ssub.s32 %s35, %s47
      %p77 = scmp.eq.s32.totalorder %s76, 0
      %s79 = sadd.s32 %s78, 1
      %s80 = scalar_select %p77, %s78, %s79
      %p83 = pneg %p77
      %p84 = scmp.eq.s32.totalorder %s28, 1
      %p85 = por %p83, %p84
      %p86 = scmp.ne.s32.totalorder %s78, %s81
      %p87 = scmp.eq.s32.totalorder %s28, 0
      %p88 = por %p86, %p87
      %p89 = scmp.ne.s32.totalorder %s78, %s81
      %p90 = scmp.eq.s32.totalorder %s33, 1
      %p91 = por %p89, %p90
      %p92 = scmp.ne.s32.totalorder %s81, %s82
      %p93 = scmp.eq.s32.totalorder %s33, 0
      %p94 = por %p92, %p93
      %p95 = scmp.ne.s32.totalorder %s81, %s82
      %p96 = scmp.eq.s32.totalorder %s34, 1
      %p97 = por %p95, %p96
      %p99 = scmp.ne.s32.totalorder %s82, %s98
      %p100 = scmp.eq.s32.totalorder %s34, 0
      %p101 = por %p99, %p100
      %s102 = ssub.s32 %s35, %s47
      %p103 = scmp.eq.s32.totalorder %s102, 0
      %s105 = sadd.s32 %s104, 1
      %s106 = scalar_select %p103, %s104, %s105
      %p109 = pneg %p103
      %p110 = scmp.eq.s32.totalorder %s28, 1
      %p111 = por %p109, %p110
      %p112 = scmp.ne.s32.totalorder %s104, %s107
      %p113 = scmp.eq.s32.totalorder %s28, 0
      %p114 = por %p112, %p113
      %p115 = scmp.ne.s32.totalorder %s104, %s107
      %p116 = scmp.eq.s32.totalorder %s33, 1
      %p117 = por %p115, %p116
      %p118 = scmp.ne.s32.totalorder %s107, %s108
      %p119 = scmp.eq.s32.totalorder %s33, 0
      %p120 = por %p118, %p119
      %p121 = scmp.ne.s32.totalorder %s107, %s108
      %p122 = scmp.eq.s32.totalorder %s34, 1
      %p123 = por %p121, %p122
      %p125 = scmp.ne.s32.totalorder %s108, %s124
      %p126 = scmp.eq.s32.totalorder %s34, 0
      %p127 = por %p125, %p126
      %s129 = sadd.s32 %s128, 1
      %p132 = scmp.eq.s32.totalorder %s28, 1
      %p133 = scmp.ne.s32.totalorder %s128, %s130
      %p134 = scmp.eq.s32.totalorder %s28, 0
      %p135 = por %p133, %p134
      %p136 = scmp.ne.s32.totalorder %s128, %s130
      %p137 = scmp.eq.s32.totalorder %s33, 1
      %p138 = por %p136, %p137
      %p139 = scmp.ne.s32.totalorder %s130, %s131
      %p140 = scmp.eq.s32.totalorder %s33, 0
      %p141 = por %p139, %p140
      %p142 = scmp.ne.s32.totalorder %s130, %s131
      %p143 = scmp.eq.s32.totalorder %s34, 1
      %p144 = por %p142, %p143
      %p146 = scmp.ne.s32.totalorder %s131, %s145
      %p147 = scmp.eq.s32.totalorder %s34, 0
      %p148 = por %p146, %p147
      %s150 = sadd.s32 %s149, 1
      %p153 = scmp.eq.s32.totalorder %s28, 1
      %p154 = scmp.ne.s32.totalorder %s149, %s151
      %p155 = scmp.eq.s32.totalorder %s28, 0
      %p156 = por %p154, %p155
      %p157 = scmp.ne.s32.totalorder %s149, %s151
      %p158 = scmp.eq.s32.totalorder %s33, 1
      %p159 = por %p157, %p158
      %p160 = scmp.ne.s32.totalorder %s151, %s152
      %p161 = scmp.eq.s32.totalorder %s33, 0
      %p162 = por %p160, %p161
      %p163 = scmp.ne.s32.totalorder %s151, %s152
      %p164 = scmp.eq.s32.totalorder %s34, 1
      %p165 = por %p163, %p164
      %p167 = scmp.ne.s32.totalorder %s152, %s166
      %p168 = scmp.eq.s32.totalorder %s34, 0
      %p169 = por %p167, %p168
      %s171 = sadd.s32 %s170, 1
      %p174 = scmp.eq.s32.totalorder %s28, 1
      %p175 = scmp.ne.s32.totalorder %s170, %s172
      %p176 = scmp.eq.s32.totalorder %s28, 0
      %p177 = por %p175, %p176
      %p178 = scmp.ne.s32.totalorder %s170, %s172
      %p179 = scmp.eq.s32.totalorder %s33, 1
      %p180 = por %p178, %p179
      %p181 = scmp.ne.s32.totalorder %s172, %s173
      %p182 = scmp.eq.s32.totalorder %s33, 0
      %p183 = por %p181, %p182
      %p184 = scmp.ne.s32.totalorder %s172, %s173
      %p185 = scmp.eq.s32.totalorder %s34, 1
      %p186 = por %p184, %p185
      %p188 = scmp.ne.s32.totalorder %s173, %s187
      %p189 = scmp.eq.s32.totalorder %s34, 0
      %p190 = por %p188, %p189
      %s192 = sadd.s32 %s191, 1
      %p195 = scmp.eq.s32.totalorder %s28, 1
      %p196 = scmp.ne.s32.totalorder %s191, %s193
      %p197 = scmp.eq.s32.totalorder %s28, 0
      %p198 = por %p196, %p197
      %p199 = scmp.ne.s32.totalorder %s191, %s193
      %p200 = scmp.eq.s32.totalorder %s33, 1
      %p201 = por %p199, %p200
      %p202 = scmp.ne.s32.totalorder %s193, %s194
      %p203 = scmp.eq.s32.totalorder %s33, 0
      %p204 = por %p202, %p203
      %p205 = scmp.ne.s32.totalorder %s193, %s194
      %p206 = scmp.eq.s32.totalorder %s34, 1
      %p207 = por %p205, %p206
      %p209 = scmp.ne.s32.totalorder %s194, %s208
      %p210 = scmp.eq.s32.totalorder %s34, 0
      %p211 = por %p209, %p210
      %s213 = sadd.s32 %s212, 1
      %p216 = scmp.eq.s32.totalorder %s28, 1
      %p217 = scmp.ne.s32.totalorder %s212, %s214
      %p218 = scmp.eq.s32.totalorder %s28, 0
      %p219 = por %p217, %p218
      %p220 = scmp.ne.s32.totalorder %s212, %s214
      %p221 = scmp.eq.s32.totalorder %s33, 1
      %p222 = por %p220, %p221
      %p223 = scmp.ne.s32.totalorder %s214, %s215
      %p224 = scmp.eq.s32.totalorder %s33, 0
      %p225 = por %p223, %p224
      %p226 = scmp.ne.s32.totalorder %s214, %s215
      %p227 = scmp.eq.s32.totalorder %s34, 1
      %p228 = por %p226, %p227
      %p230 = scmp.ne.s32.totalorder %s215, %s229
      %p231 = scmp.eq.s32.totalorder %s34, 0
      %p232 = por %p230, %p231
      %s234 = sadd.s32 %s233, 1
      %p237 = scmp.eq.s32.totalorder %s28, 1
      %p238 = scmp.ne.s32.totalorder %s233, %s235
      %p239 = scmp.eq.s32.totalorder %s28, 0
      %p240 = por %p238, %p239
      %p241 = scmp.ne.s32.totalorder %s233, %s235
      %p242 = scmp.eq.s32.totalorder %s33, 1
      %p243 = por %p241, %p242
      %p244 = scmp.ne.s32.totalorder %s235, %s236
      %p245 = scmp.eq.s32.totalorder %s33, 0
      %p246 = por %p244, %p245
      %p247 = scmp.ne.s32.totalorder %s235, %s236
      %p248 = scmp.eq.s32.totalorder %s34, 1
      %p249 = por %p247, %p248
      %p251 = scmp.ne.s32.totalorder %s236, %s250
      %p252 = scmp.eq.s32.totalorder %s34, 0
      %p253 = por %p251, %p252
      %s255 = sadd.s32 %s254, 1
      %p258 = scmp.eq.s32.totalorder %s28, 1
      %p259 = scmp.ne.s32.totalorder %s254, %s256
      %p260 = scmp.eq.s32.totalorder %s28, 0
      %p261 = por %p259, %p260
      %p262 = scmp.ne.s32.totalorder %s254, %s256
      %p263 = scmp.eq.s32.totalorder %s33, 1
      %p264 = por %p262, %p263
      %p265 = scmp.ne.s32.totalorder %s256, %s257
      %p266 = scmp.eq.s32.totalorder %s33, 0
      %p267 = por %p265, %p266
      %p268 = scmp.ne.s32.totalorder %s256, %s257
      %p269 = scmp.eq.s32.totalorder %s34, 1
      %p270 = por %p268, %p269
      %p272 = scmp.ne.s32.totalorder %s257, %s271
      %p273 = scmp.eq.s32.totalorder %s34, 0
      %p274 = por %p272, %p273
      %s276 = sadd.s32 %s275, 1
      %p279 = scmp.eq.s32.totalorder %s28, 1
      %p280 = scmp.ne.s32.totalorder %s275, %s277
      %p281 = scmp.eq.s32.totalorder %s28, 0
      %p282 = por %p280, %p281
      %p283 = scmp.ne.s32.totalorder %s275, %s277
      %p284 = scmp.eq.s32.totalorder %s33, 1
      %p285 = por %p283, %p284
      %p286 = scmp.ne.s32.totalorder %s277, %s278
      %p287 = scmp.eq.s32.totalorder %s33, 0
      %p288 = por %p286, %p287
      %p289 = scmp.ne.s32.totalorder %s277, %s278
      %p290 = scmp.eq.s32.totalorder %s34, 1
      %p291 = por %p289, %p290
      %p293 = scmp.ne.s32.totalorder %s278, %s292
      %p294 = scmp.eq.s32.totalorder %s34, 0
      %p295 = por %p293, %p294
      %s296 = ssub.s32 %s35, %s47
      %s297 = ssub.s32 %s36, %s43
      %s298 = sor.u32 %s296, %s297
      %p299 = scmp.eq.s32.totalorder %s298, 0
      %s301 = sadd.s32 %s300, 1
      %s302 = scalar_select %p299, %s300, %s301
      %p305 = pneg %p299
      %p306 = scmp.eq.s32.totalorder %s28, 1
      %p307 = por %p305, %p306
      %p308 = scmp.ne.s32.totalorder %s300, %s303
      %p309 = scmp.eq.s32.totalorder %s28, 0
      %p310 = por %p308, %p309
      %p311 = scmp.ne.s32.totalorder %s300, %s303
      %p312 = scmp.eq.s32.totalorder %s33, 1
      %p313 = por %p311, %p312
      %p314 = scmp.ne.s32.totalorder %s303, %s304
      %p315 = scmp.eq.s32.totalorder %s33, 0
      %p316 = por %p314, %p315
      %p317 = scmp.ne.s32.totalorder %s303, %s304
      %p318 = scmp.eq.s32.totalorder %s34, 1
      %p319 = por %p317, %p318
      %p321 = scmp.ne.s32.totalorder %s304, %s320
      %p322 = scmp.eq.s32.totalorder %s34, 0
      %p323 = por %p321, %p322
      %p324 = scmp.le.s32.totalorder 1, %s28
      %p325 = scmp.lt.s32.totalorder %s28, 3
      %p326 = pnand %p324, %p325
      %p327 = pneg %p326
      // Predicated region
      $region9: #{tpu_custom_call.1} parent=5 // pred_check
        _
      $region10: #{tpu_custom_call.1} parent=5 // pred_check_branch
        %329 = sbr.rel (%p326) target = $region12
      $region11: #{tpu_custom_call.1} parent=5 // pred_region
        %s330 = ssub.s32 %s28, 1
        // Predicated region
        $region13: #{tpu_custom_call.1} parent=11 // pred_check
          %p331 = pneg %p141
        $region14: #{tpu_custom_call.1} parent=11 // pred_check_branch
          %333 = sbr.rel (%p331) target = $region16
        $region15: #{tpu_custom_call.1} parent=11 // pred_region
          %s335 = ssub.s32 256, 256
          %336 = vsyncadd [#allocation11], %s335
          %s337 = sshll.u32 [#allocation10], 4
          %s338 = int_to_ptr.vmem [resolvable:$true] %s337
          %343 = dma.hbm_to_vmem [thread:$0]  %s3, 256, %s338, [#allocation11], 64, 64, 4
        $region16: #{tpu_custom_call.1} parent=11 // pred_fallthru
          _
        // Predicated region
        $region17: #{tpu_custom_call.1} parent=11 // pred_check
          %p344 = pneg %p162
        $region18: #{tpu_custom_call.1} parent=11 // pred_check_branch
          %346 = sbr.rel (%p344) target = $region20
        $region19: #{tpu_custom_call.1} parent=11 // pred_region
          _
        $region20: #{tpu_custom_call.1} parent=11 // pred_fallthru
          _
        // Predicated region
        $region21: #{tpu_custom_call.1} parent=11 // pred_check
          %p347 = pneg %p183
        $region22: #{tpu_custom_call.1} parent=11 // pred_check_branch
          %349 = sbr.rel (%p347) target = $region24
        $region23: #{tpu_custom_call.1} parent=11 // pred_region
          _
        $region24: #{tpu_custom_call.1} parent=11 // pred_fallthru
          _
        // Predicated region
        $region25: #{tpu_custom_call.1} parent=11 // pred_check
          %p350 = pneg %p204
        $region26: #{tpu_custom_call.1} parent=11 // pred_check_branch
          %352 = sbr.rel (%p350) target = $region28
        $region27: #{tpu_custom_call.1} parent=11 // pred_region
          _
        $region28: #{tpu_custom_call.1} parent=11 // pred_fallthru
          _
        // Predicated region
        $region29: #{tpu_custom_call.1} parent=11 // pred_check
          %p353 = pneg %p225
        $region30: #{tpu_custom_call.1} parent=11 // pred_check_branch
          %355 = sbr.rel (%p353) target = $region32
        $region31: #{tpu_custom_call.1} parent=11 // pred_region
          %s357 = ssub.s32 256, 256
          %358 = vsyncadd [#allocation11], %s357
          %s359 = sshll.u32 [#allocation12], 4
          %s360 = int_to_ptr.vmem [resolvable:$true] %s359
          %365 = dma.hbm_to_vmem [thread:$0]  %s7, 256, %s360, [#allocation11], 64, 64, 4
        $region32: #{tpu_custom_call.1} parent=11 // pred_fallthru
          _
        // Predicated region
        $region33: #{tpu_custom_call.1} parent=11 // pred_check
          %p366 = pneg %p246
        $region34: #{tpu_custom_call.1} parent=11 // pred_check_branch
          %368 = sbr.rel (%p366) target = $region36
        $region35: #{tpu_custom_call.1} parent=11 // pred_region
          %s370 = ssub.s32 16, 16
          %371 = vsyncadd [#allocation14], %s370
          %s373 = sshll.u32 [#allocation13], 4
          %s374 = int_to_ptr.vmem [resolvable:$true] %s373
          %376 = dma.hbm_to_vmem [thread:$0]  %s8, 16, %s374, [#allocation14]
        $region36: #{tpu_custom_call.1} parent=11 // pred_fallthru
          _
        // Predicated region
        $region37: #{tpu_custom_call.1} parent=11 // pred_check
          %p377 = pneg %p267
        $region38: #{tpu_custom_call.1} parent=11 // pred_check_branch
          %379 = sbr.rel (%p377) target = $region40
        $region39: #{tpu_custom_call.1} parent=11 // pred_region
          _
        $region40: #{tpu_custom_call.1} parent=11 // pred_fallthru
          _
        // Predicated region
        $region41: #{tpu_custom_call.1} parent=11 // pred_check
          %p380 = pneg %p288
        $region42: #{tpu_custom_call.1} parent=11 // pred_check_branch
          %382 = sbr.rel (%p380) target = $region44
        $region43: #{tpu_custom_call.1} parent=11 // pred_region
          _
        $region44: #{tpu_custom_call.1} parent=11 // pred_fallthru
          _
      $region12: #{tpu_custom_call.1} parent=5 // pred_fallthru
        _
      %p383 = scmp.lt.s32.totalorder %s28, 2
      // Predicated region
      $region45: #{tpu_custom_call.1} parent=5 // pred_check
        %p384 = pneg %p383
      $region46: #{tpu_custom_call.1} parent=5 // pred_check_branch
        %386 = sbr.rel (%p384) target = $region48
      $region47: #{tpu_custom_call.1} parent=5 // pred_region
        // Predicated region
        $region49: #{tpu_custom_call.1} parent=47 // pred_check
          %p387 = pneg %p62
        $region50: #{tpu_custom_call.1} parent=47 // pred_check_branch
          %389 = sbr.rel (%p387) target = $region52
        $region51: #{tpu_custom_call.1} parent=47 // pred_region
          %s390 = sand.u32 %s52, 1
          %s391 = scalar_lea.sflag [#allocation5], %s390
          %s392 = sand.u32 %s52, 1
          %s393 = smul.addr %s392, 4
          %s394 = scalar_lea.vmem [#allocation4], %s393
          %s396 = ssub.s32 64, 64
          %397 = vsyncadd %s391, %s396
          %s398 = sadd.s32 %s36, %s35
          %s399 = smul.addr %s398, 64
          %s400 = scalar_lea.hbm %s0, %s399
          %s402 = sshll.u32 %s394, 4
          %s403 = int_to_ptr.vmem [resolvable:$true] %s402
          %405 = dma.hbm_to_vmem [thread:$0]  %s400, 64, %s403, %s391
        $region52: #{tpu_custom_call.1} parent=47 // pred_fallthru
          _
        // Predicated region
        $region53: #{tpu_custom_call.1} parent=47 // pred_check
          %p406 = pneg %p88
        $region54: #{tpu_custom_call.1} parent=47 // pred_check_branch
          %408 = sbr.rel (%p406) target = $region56
        $region55: #{tpu_custom_call.1} parent=47 // pred_region
          %s409 = sand.u32 %s28, 1
          %s410 = scalar_lea.sflag [#allocation8], %s409
          %s411 = sand.u32 %s78, 1
          %s412 = smul.addr %s411, 4
          %s413 = scalar_lea.vmem [#allocation7], %s412
          %s415 = ssub.s32 64, 64
          %416 = vsyncadd %s410, %s415
          %s417 = smul.addr %s35, 64
          %s418 = scalar_lea.hbm %s1, %s417
          %s420 = sshll.u32 %s413, 4
          %s421 = int_to_ptr.vmem [resolvable:$true] %s420
          %423 = dma.hbm_to_vmem [thread:$0]  %s418, 64, %s421, %s410
        $region56: #{tpu_custom_call.1} parent=47 // pred_fallthru
          _
        // Predicated region
        $region57: #{tpu_custom_call.1} parent=47 // pred_check
          %p424 = pneg %p114
        $region58: #{tpu_custom_call.1} parent=47 // pred_check_branch
          %426 = sbr.rel (%p424) target = $region60
        $region59: #{tpu_custom_call.1} parent=47 // pred_region
          %s427 = sand.u32 %s28, 1
          %s428 = scalar_lea.sflag [#allocation8], %s427
          %s429 = sand.u32 %s104, 1
          %s430 = smul.addr %s429, 4
          %s431 = scalar_lea.vmem [#allocation9], %s430
          %s433 = ssub.s32 64, 64
          %434 = vsyncadd %s428, %s433
          %s435 = smul.addr %s35, 64
          %s436 = scalar_lea.hbm %s2, %s435
          %s438 = sshll.u32 %s431, 4
          %s439 = int_to_ptr.vmem [resolvable:$true] %s438
          %441 = dma.hbm_to_vmem [thread:$0]  %s436, 64, %s439, %s428
        $region60: #{tpu_custom_call.1} parent=47 // pred_fallthru
          _
      $region48: #{tpu_custom_call.1} parent=5 // pred_fallthru
        _
      %p442 = scmp.le.s32.totalorder 1, %s28
      %p443 = scmp.lt.s32.totalorder %s28, 3
      %p444 = pnand %p442, %p443
      %p445 = pneg %p444
      // Predicated region
      $region61: #{tpu_custom_call.1} parent=5 // pred_check
        _
      $region62: #{tpu_custom_call.1} parent=5 // pred_check_branch
        %447 = sbr.rel (%p444) target = $region64
      $region63: #{tpu_custom_call.1} parent=5 // pred_region
        %s448 = ssub.s32 %s28, 1
        %s449 = sand.u32 %s55, 1
        %s450 = scalar_lea.sflag [#allocation5], %s449
        %s451 = sand.u32 %s55, 1
        %s452 = smul.addr %s451, 4
        %s453 = scalar_lea.vmem [#allocation4], %s452
        // Predicated region
        $region65: #{tpu_custom_call.1} parent=63 // pred_check
          %p454 = pneg %p68
        $region66: #{tpu_custom_call.1} parent=63 // pred_check_branch
          %456 = sbr.rel (%p454) target = $region68
        $region67: #{tpu_custom_call.1} parent=63 // pred_region
          %457 = dma.done %s450, 64
        $region68: #{tpu_custom_call.1} parent=63 // pred_fallthru
          _
        %s458 = sand.u32 %s33, 1
        %s459 = scalar_lea.sflag [#allocation8], %s458
        %s460 = sand.u32 %s81, 1
        %s461 = smul.addr %s460, 4
        %s462 = scalar_lea.vmem [#allocation7], %s461
        // Predicated region
        $region69: #{tpu_custom_call.1} parent=63 // pred_check
          %p463 = pneg %p94
        $region70: #{tpu_custom_call.1} parent=63 // pred_check_branch
          %465 = sbr.rel (%p463) target = $region72
        $region71: #{tpu_custom_call.1} parent=63 // pred_region
          %466 = dma.done %s459, 64
        $region72: #{tpu_custom_call.1} parent=63 // pred_fallthru
          _
        %s467 = sand.u32 %s33, 1
        %s468 = scalar_lea.sflag [#allocation8], %s467
        %s469 = sand.u32 %s107, 1
        %s470 = smul.addr %s469, 4
        %s471 = scalar_lea.vmem [#allocation9], %s470
        // Predicated region
        $region73: #{tpu_custom_call.1} parent=63 // pred_check
          %p472 = pneg %p120
        $region74: #{tpu_custom_call.1} parent=63 // pred_check_branch
          %474 = sbr.rel (%p472) target = $region76
        $region75: #{tpu_custom_call.1} parent=63 // pred_region
          %475 = dma.done %s468, 64
        $region76: #{tpu_custom_call.1} parent=63 // pred_fallthru
          _
        // Predicated region
        $region77: #{tpu_custom_call.1} parent=63 // pred_check
          %p476 = pneg %p141
        $region78: #{tpu_custom_call.1} parent=63 // pred_check_branch
          %478 = sbr.rel (%p476) target = $region80
        $region79: #{tpu_custom_call.1} parent=63 // pred_region
          %479 = dma.done [#allocation11], 256
        $region80: #{tpu_custom_call.1} parent=63 // pred_fallthru
          _
        // Predicated region
        $region81: #{tpu_custom_call.1} parent=63 // pred_check
          %p480 = pneg %p225
        $region82: #{tpu_custom_call.1} parent=63 // pred_check_branch
          %482 = sbr.rel (%p480) target = $region84
        $region83: #{tpu_custom_call.1} parent=63 // pred_region
          %483 = dma.done [#allocation11], 256
        $region84: #{tpu_custom_call.1} parent=63 // pred_fallthru
          _
        // Predicated region
        $region85: #{tpu_custom_call.1} parent=63 // pred_check
          %p484 = pneg %p246
        $region86: #{tpu_custom_call.1} parent=63 // pred_check_branch
          %486 = sbr.rel (%p484) target = $region88
        $region87: #{tpu_custom_call.1} parent=63 // pred_region
          %487 = dma.done [#allocation14], 16
        $region88: #{tpu_custom_call.1} parent=63 // pred_fallthru
          _
        %s488 = sand.u32 %s55, 1
        %s489 = scalar_lea.sflag [#allocation5], %s488
        %s490 = sand.u32 %s55, 1
        %s491 = smul.addr %s490, 4
        %s492 = scalar_lea.vmem [#allocation4], %s491
        %p493 = pneg %p68
        %p494 = pneg %p65
        %s495 = sand.u32 %s33, 1
        %s496 = scalar_lea.sflag [#allocation8], %s495
        %s497 = sand.u32 %s81, 1
        %s498 = smul.addr %s497, 4
        %s499 = scalar_lea.vmem [#allocation7], %s498
        %p500 = pneg %p94
        %p501 = pneg %p91
        %s502 = sand.u32 %s33, 1
        %s503 = scalar_lea.sflag [#allocation8], %s502
        %s504 = sand.u32 %s107, 1
        %s505 = smul.addr %s504, 4
        %s506 = scalar_lea.vmem [#allocation9], %s505
        %p507 = pneg %p120
        %p508 = pneg %p117
        %p509 = pneg %p141
        %p510 = pneg %p138
        %p511 = pneg %p162
        %p512 = pneg %p159
        %p513 = pneg %p183
        %p514 = pneg %p180
        %p515 = pneg %p204
        %p516 = pneg %p201
        %p517 = pneg %p225
        %p518 = pneg %p222
        %p519 = pneg %p246
        %p520 = pneg %p243
        %p521 = pneg %p267
        %p522 = pneg %p264
        %p523 = pneg %p288
        %p524 = pneg %p285
        %p525 = pneg %p316
        %p526 = pneg %p313
        %s527 = sand.u32 %s303, 1
        %s528 = scalar_lea.sflag [#allocation6], %s527
        %s529 = sand.u32 %s303, 1
        %s530 = smul.addr %s529, 8
        %s531 = scalar_lea.vmem [#allocation15], %s530
        %p533 = scmp.eq.s32.totalorder %s38, 0
        // Predicated region
        $region89: #{tpu_custom_call.1} parent=63 // pred_check
          %p534 = pneg %p533
        $region90: #{tpu_custom_call.1} parent=63 // pred_check_branch
          %536 = sbr.rel (%p534) target = $region92
        $region91: #{tpu_custom_call.1} parent=63 // pred_region
          %v537 = vld [vmem:[%s462] sm:$0xf]
          %v538 = vld [vmem:[%s471] sm:$0xf]
          %v539 = vld [vmem:[%s5] sm:$0xf]
          %v540 = vld [vmem:[%s5 + $0x4] sm:$0xf]
          %v541 = vld [vmem:[%s5 + $0x8] sm:$0xf]
          %v542 = vld [vmem:[%s5 + $0xc] sm:$0xf]
          %v543 = vld [vmem:[%s6] sm:$0x1]
          %v545 = vlaneseq
          %v546 = vshrl.u32 %v545, 7
          %v547 = vsub.s32 0, %v546
          %v548 = vrot.slane %v543, %v547
          %v554 = vunpack.c.l.b16 %v539
          %v555 = vunpack.c.l.b16 %v540
          %v556 = vunpack.c.l.b16 %v541
          %v557 = vunpack.c.l.b16 %v542
          %v558 = vpack.c.b16 %v555, %v554
          %v559 = vpack.c.b16 %v557, %v556
          %vm562 = vcmask 261120
          %v564 = vsel %vm562, %v537, 0
          %566 = vmatprep.subr.bf16.mxu0 0
          %567 = vmatpush1.bf16.msra.mxu0 %v558
          %568 = vmatprep.subr.bf16.mxu0 0
          %569 = vmatpush1.bf16.msra.mxu0 %v559
          %570 = vmatprep.subr.bf16.mxu0 0
          %571 = vmatpush1.bf16.msra.mxu0 0
          %572 = vmatprep.subr.bf16.mxu0 0
          %573 = vmatpush1.bf16.msra.mxu0 0
          %574 = vmatprep.subr.bf16.mxu0 0
          %575 = vmatpush1.bf16.msra.mxu0 0
          %576 = vmatprep.subr.bf16.mxu0 0
          %577 = vmatpush1.bf16.msra.mxu0 0
          %578 = vmatprep.subr.bf16.mxu0 0
          %579 = vmatpush1.bf16.msra.mxu0 0
          %580 = vmatprep.subr.bf16.mxu0 0
          %581 = vmatpush1.bf16.msra.mxu0 0
          %582 = vmatprep.subr.bf16.mxu0 0
          %583 = vmatpush1.bf16.msra.mxu0 0
          %584 = vmatprep.subr.bf16.mxu0 0
          %585 = vmatpush1.bf16.msra.mxu0 0
          %586 = vmatprep.subr.bf16.mxu0 0
          %587 = vmatpush1.bf16.msra.mxu0 0
          %588 = vmatprep.subr.bf16.mxu0 0
          %589 = vmatpush1.bf16.msra.mxu0 0
          %590 = vmatprep.subr.bf16.mxu0 0
          %591 = vmatpush1.bf16.msra.mxu0 0
          %592 = vmatprep.subr.bf16.mxu0 0
          %593 = vmatpush1.bf16.msra.mxu0 0
          %594 = vmatprep.subr.bf16.mxu0 0
          %595 = vmatpush1.bf16.msra.mxu0 0
          %596 = vmatprep.subr.bf16.mxu0 0
          %597 = vmatpush1.bf16.msra.mxu0 0
          %598 = vmatprep.mubr.bf16.mxu0 0
          %599 = vmatmul.mubr.bf16.gmra.mrb[0].mxu0 %v564
          %v600 = vpop.f32.mrb[0].mxu0
          %v601 = vadd.f32 %v548, %v600
          %v602 = vpop.f32.mrb[0].mxu0
          %v603 = vpop.f32.mrb[0].mxu0
          %v604 = vpop.f32.mrb[0].mxu0
          %605 = vdwg.mxu0
          %v606 = vld [vmem:[#allocation12] sm:$0xf]
          %v607 = vld [vmem:[#allocation12 + $0x4] sm:$0xf]
          %v608 = vld [vmem:[#allocation12 + $0x8] sm:$0xf]
          %v609 = vld [vmem:[#allocation12 + $0xc] sm:$0xf]
          %v610 = vld [vmem:[#allocation13] sm:$0x1]
          %v612 = vlaneseq
          %v613 = vshrl.u32 %v612, 7
          %v614 = vsub.s32 0, %v613
          %v615 = vrot.slane %v610, %v614
          %v621 = vunpack.c.l.b16 %v606
          %v622 = vunpack.c.l.b16 %v607
          %v623 = vunpack.c.l.b16 %v608
          %v624 = vunpack.c.l.b16 %v609
          %v625 = vpack.c.b16 %v622, %v621
          %v626 = vpack.c.b16 %v624, %v623
          %v630 = vsel %vm562, %v538, 0
          %632 = vmatprep.subr.bf16.mxu0 0
          %633 = vmatpush1.bf16.msra.mxu0 %v625
          %634 = vmatprep.subr.bf16.mxu0 0
          %635 = vmatpush1.bf16.msra.mxu0 %v626
          %636 = vmatprep.subr.bf16.mxu0 0
          %637 = vmatpush1.bf16.msra.mxu0 0
          %638 = vmatprep.subr.bf16.mxu0 0
          %639 = vmatpush1.bf16.msra.mxu0 0
          %640 = vmatprep.subr.bf16.mxu0 0
          %641 = vmatpush1.bf16.msra.mxu0 0
          %642 = vmatprep.subr.bf16.mxu0 0
          %643 = vmatpush1.bf16.msra.mxu0 0
          %644 = vmatprep.subr.bf16.mxu0 0
          %645 = vmatpush1.bf16.msra.mxu0 0
          %646 = vmatprep.subr.bf16.mxu0 0
          %647 = vmatpush1.bf16.msra.mxu0 0
          %648 = vmatprep.subr.bf16.mxu0 0
          %649 = vmatpush1.bf16.msra.mxu0 0
          %650 = vmatprep.subr.bf16.mxu0 0
          %651 = vmatpush1.bf16.msra.mxu0 0
          %652 = vmatprep.subr.bf16.mxu0 0
          %653 = vmatpush1.bf16.msra.mxu0 0
          %654 = vmatprep.subr.bf16.mxu0 0
          %655 = vmatpush1.bf16.msra.mxu0 0
          %656 = vmatprep.subr.bf16.mxu0 0
          %657 = vmatpush1.bf16.msra.mxu0 0
          %658 = vmatprep.subr.bf16.mxu0 0
          %659 = vmatpush1.bf16.msra.mxu0 0
          %660 = vmatprep.subr.bf16.mxu0 0
          %661 = vmatpush1.bf16.msra.mxu0 0
          %662 = vmatprep.subr.bf16.mxu0 0
          %663 = vmatpush1.bf16.msra.mxu0 0
          %664 = vmatprep.mubr.bf16.mxu0 0
          %665 = vmatmul.mubr.bf16.gmra.mrb[0].mxu0 %v630
          %v666 = vpop.f32.mrb[0].mxu0
          %v667 = vadd.f32 %v615, %v666
          %v668 = vpop.f32.mrb[0].mxu0
          %v669 = vpop.f32.mrb[0].mxu0
          %v670 = vpop.f32.mrb[0].mxu0
          %671 = vdwg.mxu0
          %v672 = vpack.c.bf16 %v601, %v601
          %vm673 = vcmask 257024
          %674 = vst.msk [vmem:[#allocation2] sm:$0xf] %vm673, %v672
          %v675 = vpack.c.bf16 %v667, %v667
          %676 = vst.msk [vmem:[#allocation3] sm:$0xf] %vm673, %v675
        $region92: #{tpu_custom_call.1} parent=63 // pred_fallthru
          _
        %v677 = vld [vmem:[%s453] sm:$0xf]
        %v678 = vld [vmem:[#allocation10] sm:$0xf]
        %v679 = vld [vmem:[#allocation10 + $0x4] sm:$0xf]
        %v680 = vld [vmem:[#allocation10 + $0x8] sm:$0xf]
        %v681 = vld [vmem:[#allocation10 + $0xc] sm:$0xf]
        %v682 = vld [vmem:[%s4] sm:$0x1]
        %v684 = vlaneseq
        %v685 = vshrl.u32 %v684, 7
        %v686 = vsub.s32 0, %v685
        %v687 = vrot.slane %v682, %v686
        %v693 = vunpack.c.l.b16 %v678
        %v694 = vunpack.c.l.b16 %v679
        %v695 = vunpack.c.l.b16 %v680
        %v696 = vunpack.c.l.b16 %v681
        %v697 = vpack.c.b16 %v694, %v693
        %v698 = vpack.c.b16 %v696, %v695
        %vm701 = vcmask 261120
        %v703 = vsel %vm701, %v677, 0
        %705 = vmatprep.subr.bf16.mxu0 0
        %706 = vmatpush1.bf16.msra.mxu0 %v697
        %707 = vmatprep.subr.bf16.mxu0 0
        %708 = vmatpush1.bf16.msra.mxu0 %v698
        %709 = vmatprep.subr.bf16.mxu0 0
        %710 = vmatpush1.bf16.msra.mxu0 0
        %711 = vmatprep.subr.bf16.mxu0 0
        %712 = vmatpush1.bf16.msra.mxu0 0
        %713 = vmatprep.subr.bf16.mxu0 0
        %714 = vmatpush1.bf16.msra.mxu0 0
        %715 = vmatprep.subr.bf16.mxu0 0
        %716 = vmatpush1.bf16.msra.mxu0 0
        %717 = vmatprep.subr.bf16.mxu0 0
        %718 = vmatpush1.bf16.msra.mxu0 0
        %719 = vmatprep.subr.bf16.mxu0 0
        %720 = vmatpush1.bf16.msra.mxu0 0
        %721 = vmatprep.subr.bf16.mxu0 0
        %722 = vmatpush1.bf16.msra.mxu0 0
        %723 = vmatprep.subr.bf16.mxu0 0
        %724 = vmatpush1.bf16.msra.mxu0 0
        %725 = vmatprep.subr.bf16.mxu0 0
        %726 = vmatpush1.bf16.msra.mxu0 0
        %727 = vmatprep.subr.bf16.mxu0 0
        %728 = vmatpush1.bf16.msra.mxu0 0
        %729 = vmatprep.subr.bf16.mxu0 0
        %730 = vmatpush1.bf16.msra.mxu0 0
        %731 = vmatprep.subr.bf16.mxu0 0
        %732 = vmatpush1.bf16.msra.mxu0 0
        %733 = vmatprep.subr.bf16.mxu0 0
        %734 = vmatpush1.bf16.msra.mxu0 0
        %735 = vmatprep.subr.bf16.mxu0 0
        %736 = vmatpush1.bf16.msra.mxu0 0
        %737 = vmatprep.mubr.bf16.mxu0 0
        %738 = vmatmul.mubr.bf16.gmra.mrb[0].mxu0 %v703
        %v739 = vpop.f32.mrb[0].mxu0
        %v740 = vadd.f32 %v687, %v739
        %v741 = vpop.f32.mrb[0].mxu0
        %v742 = vpop.f32.mrb[0].mxu0
        %v743 = vpop.f32.mrb[0].mxu0
        %744 = vdwg.mxu0
        %v745 = vpack.c.bf16 %v740, %v740
        %v746 = vld [vmem:[#allocation2] sm:$0xf]
        %v747 = vld [vmem:[#allocation3] sm:$0xf]
        %vm748 = vcmask 64512
        %v750 = vsel %vm748, %v745, 0
        %v753 = vsel %vm748, %v746, 0
        %755 = vmatprep.subr.bf16.mxu0 0
        %756 = vmatpush1.bf16.xpose.msra.mxu0 %v753
        %757 = vmatprep.subr.bf16.mxu0 0
        %758 = vmatpush1.bf16.xpose.msra.mxu0 0
        %759 = vmatprep.subr.bf16.mxu0 0
        %760 = vmatpush1.bf16.xpose.msra.mxu0 0
        %761 = vmatprep.subr.bf16.mxu0 0
        %762 = vmatpush1.bf16.xpose.msra.mxu0 0
        %763 = vmatprep.subr.bf16.mxu0 0
        %764 = vmatpush1.bf16.xpose.msra.mxu0 0
        %765 = vmatprep.subr.bf16.mxu0 0
        %766 = vmatpush1.bf16.xpose.msra.mxu0 0
        %767 = vmatprep.subr.bf16.mxu0 0
        %768 = vmatpush1.bf16.xpose.msra.mxu0 0
        %769 = vmatprep.subr.bf16.mxu0 0
        %770 = vmatpush1.bf16.xpose.msra.mxu0 0
        %771 = vmatprep.subr.bf16.mxu0 0
        %772 = vmatpush1.bf16.xpose.msra.mxu0 0
        %773 = vmatprep.subr.bf16.mxu0 0
        %774 = vmatpush1.bf16.xpose.msra.mxu0 0
        %775 = vmatprep.subr.bf16.mxu0 0
        %776 = vmatpush1.bf16.xpose.msra.mxu0 0
        %777 = vmatprep.subr.bf16.mxu0 0
        %778 = vmatpush1.bf16.xpose.msra.mxu0 0
        %779 = vmatprep.subr.bf16.mxu0 0
        %780 = vmatpush1.bf16.xpose.msra.mxu0 0
        %781 = vmatprep.subr.bf16.mxu0 0
        %782 = vmatpush1.bf16.xpose.msra.mxu0 0
        %783 = vmatprep.subr.bf16.mxu0 0
        %784 = vmatpush1.bf16.xpose.msra.mxu0 0
        %785 = vmatprep.subr.bf16.mxu0 0
        %786 = vmatpush1.bf16.xpose.msra.mxu0 0
        %787 = vmatprep.mubr.bf16.mxu0 0
        %788 = vmatmul.mubr.bf16.gmra.mrb[0].mxu0 %v750
        %v789 = vpop.f32.mrb[0].mxu0
        %v790 = vadd.f32 0.0, %v789
        %v791 = vpop.f32.mrb[0].mxu0
        %v792 = vpop.f32.mrb[0].mxu0
        %v793 = vpop.f32.mrb[0].mxu0
        %794 = vdwg.mxu0
        %v795 = vsel %vm748, %v790, -inf
        %796 = vmax.xlane.f32.xlu0 %v795
        %v797 = vpop.xlane.xlu0 %796
        %v798 = vsub.f32 %v790, %v797
        %v799 = vmul.f32 %v798, 1.442695
        %v800 = vpow.pop %v799
        %v801 = vsel %vm748, %v800, 0.0
        %802 = vadd.xlane.f32.xlu0 %v801
        %v803 = vpop.xlane.xlu0 %802
        %v804 = vpack.c.bf16 %v800, %v800
        %v806 = vsel %vm748, %v804, 0
        %vm808 = vcmask 1043456
        %v810 = vsel %vm808, %v747, 0
        %812 = vmatprep.subr.bf16.mxu0 0
        %813 = vmatpush1.bf16.msra.mxu0 %v810
        %814 = vmatprep.subr.bf16.mxu0 0
        %815 = vmatpush1.bf16.msra.mxu0 0
        %816 = vmatprep.subr.bf16.mxu0 0
        %817 = vmatpush1.bf16.msra.mxu0 0
        %818 = vmatprep.subr.bf16.mxu0 0
        %819 = vmatpush1.bf16.msra.mxu0 0
        %820 = vmatprep.subr.bf16.mxu0 0
        %821 = vmatpush1.bf16.msra.mxu0 0
        %822 = vmatprep.subr.bf16.mxu0 0
        %823 = vmatpush1.bf16.msra.mxu0 0
        %824 = vmatprep.subr.bf16.mxu0 0
        %825 = vmatpush1.bf16.msra.mxu0 0
        %826 = vmatprep.subr.bf16.mxu0 0
        %827 = vmatpush1.bf16.msra.mxu0 0
        %828 = vmatprep.subr.bf16.mxu0 0
        %829 = vmatpush1.bf16.msra.mxu0 0
        %830 = vmatprep.subr.bf16.mxu0 0
        %831 = vmatpush1.bf16.msra.mxu0 0
        %832 = vmatprep.subr.bf16.mxu0 0
        %833 = vmatpush1.bf16.msra.mxu0 0
        %834 = vmatprep.subr.bf16.mxu0 0
        %835 = vmatpush1.bf16.msra.mxu0 0
        %836 = vmatprep.subr.bf16.mxu0 0
        %837 = vmatpush1.bf16.msra.mxu0 0
        %838 = vmatprep.subr.bf16.mxu0 0
        %839 = vmatpush1.bf16.msra.mxu0 0
        %840 = vmatprep.subr.bf16.mxu0 0
        %841 = vmatpush1.bf16.msra.mxu0 0
        %842 = vmatprep.subr.bf16.mxu0 0
        %843 = vmatpush1.bf16.msra.mxu0 0
        %844 = vmatprep.mubr.bf16.mxu0 0
        %845 = vmatmul.mubr.bf16.gmra.mrb[0].mxu0 %v806
        %v846 = vpop.f32.mrb[0].mxu0
        %v847 = vadd.f32 0.0, %v846
        %v848 = vpop.f32.mrb[0].mxu0
        %v849 = vpop.f32.mrb[0].mxu0
        %v850 = vpop.f32.mrb[0].mxu0
        %851 = vdwg.mxu0
        %v852 = vrcp.pop %v803
        %v853 = vmul.f32 %v847, %v852
        %v854 = vpack.c.bf16 %v853, %v853
        %v855 = vld [vmem:[%s9] sm:$0xf]
        %857 = vrot.lane.b32.xlu0 %v745, 120
        %v858 = vpop.permute.xlu0 %857
        %v860 = vunpack.c.l.b16 %v746
        %v861 = vpack.c.b16 %v860, %v860
        %862 = vrot.lane.b32.xlu0 %v861, 120
        %v863 = vpop.permute.xlu0 %862
        %v865 = vsel %vm748, %v858, 0
        %v868 = vsel %vm748, %v863, 0
        %870 = vmatprep.subr.bf16.mxu0 0
        %871 = vmatpush1.bf16.xpose.msra.mxu0 %v868
        %872 = vmatprep.subr.bf16.mxu0 0
        %873 = vmatpush1.bf16.xpose.msra.mxu0 0
        %874 = vmatprep.subr.bf16.mxu0 0
        %875 = vmatpush1.bf16.xpose.msra.mxu0 0
        %876 = vmatprep.subr.bf16.mxu0 0
        %877 = vmatpush1.bf16.xpose.msra.mxu0 0
        %878 = vmatprep.subr.bf16.mxu0 0
        %879 = vmatpush1.bf16.xpose.msra.mxu0 0
        %880 = vmatprep.subr.bf16.mxu0 0
        %881 = vmatpush1.bf16.xpose.msra.mxu0 0
        %882 = vmatprep.subr.bf16.mxu0 0
        %883 = vmatpush1.bf16.xpose.msra.mxu0 0
        %884 = vmatprep.subr.bf16.mxu0 0
        %885 = vmatpush1.bf16.xpose.msra.mxu0 0
        %886 = vmatprep.subr.bf16.mxu0 0
        %887 = vmatpush1.bf16.xpose.msra.mxu0 0
        %888 = vmatprep.subr.bf16.mxu0 0
        %889 = vmatpush1.bf16.xpose.msra.mxu0 0
        %890 = vmatprep.subr.bf16.mxu0 0
        %891 = vmatpush1.bf16.xpose.msra.mxu0 0
        %892 = vmatprep.subr.bf16.mxu0 0
        %893 = vmatpush1.bf16.xpose.msra.mxu0 0
        %894 = vmatprep.subr.bf16.mxu0 0
        %895 = vmatpush1.bf16.xpose.msra.mxu0 0
        %896 = vmatprep.subr.bf16.mxu0 0
        %897 = vmatpush1.bf16.xpose.msra.mxu0 0
        %898 = vmatprep.subr.bf16.mxu0 0
        %899 = vmatpush1.bf16.xpose.msra.mxu0 0
        %900 = vmatprep.subr.bf16.mxu0 0
        %901 = vmatpush1.bf16.xpose.msra.mxu0 0
        %902 = vmatprep.mubr.bf16.mxu0 0
        %903 = vmatmul.mubr.bf16.gmra.mrb[0].mxu0 %v865
        %v904 = vpop.f32.mrb[0].mxu0
        %v905 = vadd.f32 0.0, %v904
        %v906 = vpop.f32.mrb[0].mxu0
        %v907 = vpop.f32.mrb[0].mxu0
        %v908 = vpop.f32.mrb[0].mxu0
        %909 = vdwg.mxu0
        %v910 = vsel %vm748, %v905, -inf
        %911 = vmax.xlane.f32.xlu0 %v910
        %v912 = vpop.xlane.xlu0 %911
        %v913 = vsub.f32 %v905, %v912
        %v914 = vmul.f32 %v913, 1.442695
        %v915 = vpow.pop %v914
        %v916 = vsel %vm748, %v915, 0.0
        %917 = vadd.xlane.f32.xlu0 %v916
        %v918 = vpop.xlane.xlu0 %917
        %v919 = vpack.c.bf16 %v915, %v915
        %v921 = vunpack.c.l.b16 %v747
        %v922 = vpack.c.b16 %v921, %v921
        %923 = vrot.lane.b32.xlu0 %v922, 120
        %v924 = vpop.permute.xlu0 %923
        %v926 = vsel %vm748, %v919, 0
        %v929 = vsel %vm808, %v924, 0
        %931 = vmatprep.subr.bf16.mxu0 0
        %932 = vmatpush1.bf16.msra.mxu0 %v929
        %933 = vmatprep.subr.bf16.mxu0 0
        %934 = vmatpush1.bf16.msra.mxu0 0
        %935 = vmatprep.subr.bf16.mxu0 0
        %936 = vmatpush1.bf16.msra.mxu0 0
        %937 = vmatprep.subr.bf16.mxu0 0
        %938 = vmatpush1.bf16.msra.mxu0 0
        %939 = vmatprep.subr.bf16.mxu0 0
        %940 = vmatpush1.bf16.msra.mxu0 0
        %941 = vmatprep.subr.bf16.mxu0 0
        %942 = vmatpush1.bf16.msra.mxu0 0
        %943 = vmatprep.subr.bf16.mxu0 0
        %944 = vmatpush1.bf16.msra.mxu0 0
        %945 = vmatprep.subr.bf16.mxu0 0
        %946 = vmatpush1.bf16.msra.mxu0 0
        %947 = vmatprep.subr.bf16.mxu0 0
        %948 = vmatpush1.bf16.msra.mxu0 0
        %949 = vmatprep.subr.bf16.mxu0 0
        %950 = vmatpush1.bf16.msra.mxu0 0
        %951 = vmatprep.subr.bf16.mxu0 0
        %952 = vmatpush1.bf16.msra.mxu0 0
        %953 = vmatprep.subr.bf16.mxu0 0
        %954 = vmatpush1.bf16.msra.mxu0 0
        %955 = vmatprep.subr.bf16.mxu0 0
        %956 = vmatpush1.bf16.msra.mxu0 0
        %957 = vmatprep.subr.bf16.mxu0 0
        %958 = vmatpush1.bf16.msra.mxu0 0
        %959 = vmatprep.subr.bf16.mxu0 0
        %960 = vmatpush1.bf16.msra.mxu0 0
        %961 = vmatprep.subr.bf16.mxu0 0
        %962 = vmatpush1.bf16.msra.mxu0 0
        %963 = vmatprep.mubr.bf16.mxu0 0
        %964 = vmatmul.mubr.bf16.gmra.mrb[0].mxu0 %v926
        %v965 = vpop.f32.mrb[0].mxu0
        %v966 = vadd.f32 0.0, %v965
        %v967 = vpop.f32.mrb[0].mxu0
        %v968 = vpop.f32.mrb[0].mxu0
        %v969 = vpop.f32.mrb[0].mxu0
        %970 = vdwg.mxu0
        %v971 = vrcp.pop %v918
        %v972 = vmul.f32 %v966, %v971
        %v973 = vpack.c.bf16 %v972, %v972
        %v974 = vld [vmem:[%s9 + $0x4] sm:$0xf]
        %v976 = vsel %vm748, %v973, 0
        %v979 = vsel %vm808, %v974, 0
        %981 = vmatprep.subr.bf16.mxu0 0
        %982 = vmatpush1.bf16.msra.mxu0 %v979
        %983 = vmatprep.subr.bf16.mxu0 0
        %984 = vmatpush1.bf16.msra.mxu0 0
        %985 = vmatprep.subr.bf16.mxu0 0
        %986 = vmatpush1.bf16.msra.mxu0 0
        %987 = vmatprep.subr.bf16.mxu0 0
        %988 = vmatpush1.bf16.msra.mxu0 0
        %989 = vmatprep.subr.bf16.mxu0 0
        %990 = vmatpush1.bf16.msra.mxu0 0
        %991 = vmatprep.subr.bf16.mxu0 0
        %992 = vmatpush1.bf16.msra.mxu0 0
        %993 = vmatprep.subr.bf16.mxu0 0
        %994 = vmatpush1.bf16.msra.mxu0 0
        %995 = vmatprep.subr.bf16.mxu0 0
        %996 = vmatpush1.bf16.msra.mxu0 0
        %997 = vmatprep.subr.bf16.mxu0 0
        %998 = vmatpush1.bf16.msra.mxu0 0
        %999 = vmatprep.subr.bf16.mxu0 0
        %1000 = vmatpush1.bf16.msra.mxu0 0
        %1001 = vmatprep.subr.bf16.mxu0 0
        %1002 = vmatpush1.bf16.msra.mxu0 0
        %1003 = vmatprep.subr.bf16.mxu0 0
        %1004 = vmatpush1.bf16.msra.mxu0 0
        %1005 = vmatprep.subr.bf16.mxu0 0
        %1006 = vmatpush1.bf16.msra.mxu0 0
        %1007 = vmatprep.subr.bf16.mxu0 0
        %1008 = vmatpush1.bf16.msra.mxu0 0
        %1009 = vmatprep.subr.bf16.mxu0 0
        %1010 = vmatpush1.bf16.msra.mxu0 0
        %1011 = vmatprep.subr.bf16.mxu0 0
        %1012 = vmatpush1.bf16.msra.mxu0 0
        %1013 = vmatprep.mubr.bf16.mxu0 0
        %1014 = vmatmul.mubr.bf16.gmra.mrb[0].mxu0 %v976
        %v1015 = vpop.f32.mrb[0].mxu0
        %v1016 = vadd.f32 0.0, %v1015
        %v1017 = vpop.f32.mrb[0].mxu0
        %v1018 = vpop.f32.mrb[0].mxu0
        %v1019 = vpop.f32.mrb[0].mxu0
        %1020 = vdwg.mxu0
        %v1022 = vsel %vm748, %v854, 0
        %v1025 = vsel %vm808, %v855, 0
        %1027 = vmatprep.subr.bf16.mxu0 0
        %1028 = vmatpush1.bf16.msra.mxu0 %v1025
        %1029 = vmatprep.subr.bf16.mxu0 0
        %1030 = vmatpush1.bf16.msra.mxu0 0
        %1031 = vmatprep.subr.bf16.mxu0 0
        %1032 = vmatpush1.bf16.msra.mxu0 0
        %1033 = vmatprep.subr.bf16.mxu0 0
        %1034 = vmatpush1.bf16.msra.mxu0 0
        %1035 = vmatprep.subr.bf16.mxu0 0
        %1036 = vmatpush1.bf16.msra.mxu0 0
        %1037 = vmatprep.subr.bf16.mxu0 0
        %1038 = vmatpush1.bf16.msra.mxu0 0
        %1039 = vmatprep.subr.bf16.mxu0 0
        %1040 = vmatpush1.bf16.msra.mxu0 0
        %1041 = vmatprep.subr.bf16.mxu0 0
        %1042 = vmatpush1.bf16.msra.mxu0 0
        %1043 = vmatprep.subr.bf16.mxu0 0
        %1044 = vmatpush1.bf16.msra.mxu0 0
        %1045 = vmatprep.subr.bf16.mxu0 0
        %1046 = vmatpush1.bf16.msra.mxu0 0
        %1047 = vmatprep.subr.bf16.mxu0 0
        %1048 = vmatpush1.bf16.msra.mxu0 0
        %1049 = vmatprep.subr.bf16.mxu0 0
        %1050 = vmatpush1.bf16.msra.mxu0 0
        %1051 = vmatprep.subr.bf16.mxu0 0
        %1052 = vmatpush1.bf16.msra.mxu0 0
        %1053 = vmatprep.subr.bf16.mxu0 0
        %1054 = vmatpush1.bf16.msra.mxu0 0
        %1055 = vmatprep.subr.bf16.mxu0 0
        %1056 = vmatpush1.bf16.msra.mxu0 0
        %1057 = vmatprep.subr.bf16.mxu0 0
        %1058 = vmatpush1.bf16.msra.mxu0 0
        %1059 = vmatprep.mubr.bf16.mxu0 0
        %1060 = vmatmul.mubr.bf16.gmra.mrb[0].mxu0 %v1022
        %v1061 = vpop.f32.mrb[0].mxu0
        %v1062 = vadd.f32 %v1016, %v1061
        %v1063 = vpop.f32.mrb[0].mxu0
        %v1064 = vpop.f32.mrb[0].mxu0
        %v1065 = vpop.f32.mrb[0].mxu0
        %1066 = vdwg.mxu0
        %1067 = vrot.lane.b32.xlu0 %v745, 112
        %v1068 = vpop.permute.xlu0 %1067
        %1069 = vrot.lane.b32.xlu0 %v861, 112
        %v1070 = vpop.permute.xlu0 %1069
        %v1072 = vsel %vm748, %v1068, 0
        %v1075 = vsel %vm748, %v1070, 0
        %1077 = vmatprep.subr.bf16.mxu0 0
        %1078 = vmatpush1.bf16.xpose.msra.mxu0 %v1075
        %1079 = vmatprep.subr.bf16.mxu0 0
        %1080 = vmatpush1.bf16.xpose.msra.mxu0 0
        %1081 = vmatprep.subr.bf16.mxu0 0
        %1082 = vmatpush1.bf16.xpose.msra.mxu0 0
        %1083 = vmatprep.subr.bf16.mxu0 0
        %1084 = vmatpush1.bf16.xpose.msra.mxu0 0
        %1085 = vmatprep.subr.bf16.mxu0 0
        %1086 = vmatpush1.bf16.xpose.msra.mxu0 0
        %1087 = vmatprep.subr.bf16.mxu0 0
        %1088 = vmatpush1.bf16.xpose.msra.mxu0 0
        %1089 = vmatprep.subr.bf16.mxu0 0
        %1090 = vmatpush1.bf16.xpose.msra.mxu0 0
        %1091 = vmatprep.subr.bf16.mxu0 0
        %1092 = vmatpush1.bf16.xpose.msra.mxu0 0
        %1093 = vmatprep.subr.bf16.mxu0 0
        %1094 = vmatpush1.bf16.xpose.msra.mxu0 0
        %1095 = vmatprep.subr.bf16.mxu0 0
        %1096 = vmatpush1.bf16.xpose.msra.mxu0 0
        %1097 = vmatprep.subr.bf16.mxu0 0
        %1098 = vmatpush1.bf16.xpose.msra.mxu0 0
        %1099 = vmatprep.subr.bf16.mxu0 0
        %1100 = vmatpush1.bf16.xpose.msra.mxu0 0
        %1101 = vmatprep.subr.bf16.mxu0 0
        %1102 = vmatpush1.bf16.xpose.msra.mxu0 0
        %1103 = vmatprep.subr.bf16.mxu0 0
        %1104 = vmatpush1.bf16.xpose.msra.mxu0 0
        %1105 = vmatprep.subr.bf16.mxu0 0
        %1106 = vmatpush1.bf16.xpose.msra.mxu0 0
        %1107 = vmatprep.subr.bf16.mxu0 0
        %1108 = vmatpush1.bf16.xpose.msra.mxu0 0
        %1109 = vmatprep.mubr.bf16.mxu0 0
        %1110 = vmatmul.mubr.bf16.gmra.mrb[0].mxu0 %v1072
        %v1111 = vpop.f32.mrb[0].mxu0
        %v1112 = vadd.f32 0.0, %v1111
        %v1113 = vpop.f32.mrb[0].mxu0
        %v1114 = vpop.f32.mrb[0].mxu0
        %v1115 = vpop.f32.mrb[0].mxu0
        %1116 = vdwg.mxu0
        %v1117 = vsel %vm748, %v1112, -inf
        %1118 = vmax.xlane.f32.xlu0 %v1117
        %v1119 = vpop.xlane.xlu0 %1118
        %v1120 = vsub.f32 %v1112, %v1119
        %v1121 = vmul.f32 %v1120, 1.442695
        %v1122 = vpow.pop %v1121
        %v1123 = vsel %vm748, %v1122, 0.0
        %1124 = vadd.xlane.f32.xlu0 %v1123
        %v1125 = vpop.xlane.xlu0 %1124
        %v1126 = vpack.c.bf16 %v1122, %v1122
        %1127 = vrot.lane.b32.xlu0 %v922, 112
        %v1128 = vpop.permute.xlu0 %1127
        %v1130 = vsel %vm748, %v1126, 0
        %v1133 = vsel %vm808, %v1128, 0
        %1135 = vmatprep.subr.bf16.mxu0 0
        %1136 = vmatpush1.bf16.msra.mxu0 %v1133
        %1137 = vmatprep.subr.bf16.mxu0 0
        %1138 = vmatpush1.bf16.msra.mxu0 0
        %1139 = vmatprep.subr.bf16.mxu0 0
        %1140 = vmatpush1.bf16.msra.mxu0 0
        %1141 = vmatprep.subr.bf16.mxu0 0
        %1142 = vmatpush1.bf16.msra.mxu0 0
        %1143 = vmatprep.subr.bf16.mxu0 0
        %1144 = vmatpush1.bf16.msra.mxu0 0
        %1145 = vmatprep.subr.bf16.mxu0 0
        %1146 = vmatpush1.bf16.msra.mxu0 0
        %1147 = vmatprep.subr.bf16.mxu0 0
        %1148 = vmatpush1.bf16.msra.mxu0 0
        %1149 = vmatprep.subr.bf16.mxu0 0
        %1150 = vmatpush1.bf16.msra.mxu0 0
        %1151 = vmatprep.subr.bf16.mxu0 0
        %1152 = vmatpush1.bf16.msra.mxu0 0
        %1153 = vmatprep.subr.bf16.mxu0 0
        %1154 = vmatpush1.bf16.msra.mxu0 0
        %1155 = vmatprep.subr.bf16.mxu0 0
        %1156 = vmatpush1.bf16.msra.mxu0 0
        %1157 = vmatprep.subr.bf16.mxu0 0
        %1158 = vmatpush1.bf16.msra.mxu0 0
        %1159 = vmatprep.subr.bf16.mxu0 0
        %1160 = vmatpush1.bf16.msra.mxu0 0
        %1161 = vmatprep.subr.bf16.mxu0 0
        %1162 = vmatpush1.bf16.msra.mxu0 0
        %1163 = vmatprep.subr.bf16.mxu0 0
        %1164 = vmatpush1.bf16.msra.mxu0 0
        %1165 = vmatprep.subr.bf16.mxu0 0
        %1166 = vmatpush1.bf16.msra.mxu0 0
        %1167 = vmatprep.mubr.bf16.mxu0 0
        %1168 = vmatmul.mubr.bf16.gmra.mrb[0].mxu0 %v1130
        %v1169 = vpop.f32.mrb[0].mxu0
        %v1170 = vadd.f32 0.0, %v1169
        %v1171 = vpop.f32.mrb[0].mxu0
        %v1172 = vpop.f32.mrb[0].mxu0
        %v1173 = vpop.f32.mrb[0].mxu0
        %1174 = vdwg.mxu0
        %v1175 = vrcp.pop %v1125
        %v1176 = vmul.f32 %v1170, %v1175
        %v1177 = vpack.c.bf16 %v1176, %v1176
        %v1178 = vld [vmem:[%s9 + $0x8] sm:$0xf]
        %v1180 = vsel %vm748, %v1177, 0
        %v1183 = vsel %vm808, %v1178, 0
        %1185 = vmatprep.subr.bf16.mxu0 0
        %1186 = vmatpush1.bf16.msra.mxu0 %v1183
        %1187 = vmatprep.subr.bf16.mxu0 0
        %1188 = vmatpush1.bf16.msra.mxu0 0
        %1189 = vmatprep.subr.bf16.mxu0 0
        %1190 = vmatpush1.bf16.msra.mxu0 0
        %1191 = vmatprep.subr.bf16.mxu0 0
        %1192 = vmatpush1.bf16.msra.mxu0 0
        %1193 = vmatprep.subr.bf16.mxu0 0
        %1194 = vmatpush1.bf16.msra.mxu0 0
        %1195 = vmatprep.subr.bf16.mxu0 0
        %1196 = vmatpush1.bf16.msra.mxu0 0
        %1197 = vmatprep.subr.bf16.mxu0 0
        %1198 = vmatpush1.bf16.msra.mxu0 0
        %1199 = vmatprep.subr.bf16.mxu0 0
        %1200 = vmatpush1.bf16.msra.mxu0 0
        %1201 = vmatprep.subr.bf16.mxu0 0
        %1202 = vmatpush1.bf16.msra.mxu0 0
        %1203 = vmatprep.subr.bf16.mxu0 0
        %1204 = vmatpush1.bf16.msra.mxu0 0
        %1205 = vmatprep.subr.bf16.mxu0 0
        %1206 = vmatpush1.bf16.msra.mxu0 0
        %1207 = vmatprep.subr.bf16.mxu0 0
        %1208 = vmatpush1.bf16.msra.mxu0 0
        %1209 = vmatprep.subr.bf16.mxu0 0
        %1210 = vmatpush1.bf16.msra.mxu0 0
        %1211 = vmatprep.subr.bf16.mxu0 0
        %1212 = vmatpush1.bf16.msra.mxu0 0
        %1213 = vmatprep.subr.bf16.mxu0 0
        %1214 = vmatpush1.bf16.msra.mxu0 0
        %1215 = vmatprep.subr.bf16.mxu0 0
        %1216 = vmatpush1.bf16.msra.mxu0 0
        %1217 = vmatprep.mubr.bf16.mxu0 0
        %1218 = vmatmul.mubr.bf16.gmra.mrb[0].mxu0 %v1180
        %v1219 = vpop.f32.mrb[0].mxu0
        %v1220 = vadd.f32 0.0, %v1219
        %v1221 = vpop.f32.mrb[0].mxu0
        %v1222 = vpop.f32.mrb[0].mxu0
        %v1223 = vpop.f32.mrb[0].mxu0
        %1224 = vdwg.mxu0
        %v1225 = vadd.f32 %v1062, %v1220
        %1226 = vrot.lane.b32.xlu0 %v745, 104
        %v1227 = vpop.permute.xlu0 %1226
        %1228 = vrot.lane.b32.xlu0 %v861, 104
        %v1229 = vpop.permute.xlu0 %1228
        %v1231 = vsel %vm748, %v1227, 0
        %v1234 = vsel %vm748, %v1229, 0
        %1236 = vmatprep.subr.bf16.mxu0 0
        %1237 = vmatpush1.bf16.xpose.msra.mxu0 %v1234
        %1238 = vmatprep.subr.bf16.mxu0 0
        %1239 = vmatpush1.bf16.xpose.msra.mxu0 0
        %1240 = vmatprep.subr.bf16.mxu0 0
        %1241 = vmatpush1.bf16.xpose.msra.mxu0 0
        %1242 = vmatprep.subr.bf16.mxu0 0
        %1243 = vmatpush1.bf16.xpose.msra.mxu0 0
        %1244 = vmatprep.subr.bf16.mxu0 0
        %1245 = vmatpush1.bf16.xpose.msra.mxu0 0
        %1246 = vmatprep.subr.bf16.mxu0 0
        %1247 = vmatpush1.bf16.xpose.msra.mxu0 0
        %1248 = vmatprep.subr.bf16.mxu0 0
        %1249 = vmatpush1.bf16.xpose.msra.mxu0 0
        %1250 = vmatprep.subr.bf16.mxu0 0
        %1251 = vmatpush1.bf16.xpose.msra.mxu0 0
        %1252 = vmatprep.subr.bf16.mxu0 0
        %1253 = vmatpush1.bf16.xpose.msra.mxu0 0
        %1254 = vmatprep.subr.bf16.mxu0 0
        %1255 = vmatpush1.bf16.xpose.msra.mxu0 0
        %1256 = vmatprep.subr.bf16.mxu0 0
        %1257 = vmatpush1.bf16.xpose.msra.mxu0 0
        %1258 = vmatprep.subr.bf16.mxu0 0
        %1259 = vmatpush1.bf16.xpose.msra.mxu0 0
        %1260 = vmatprep.subr.bf16.mxu0 0
        %1261 = vmatpush1.bf16.xpose.msra.mxu0 0
        %1262 = vmatprep.subr.bf16.mxu0 0
        %1263 = vmatpush1.bf16.xpose.msra.mxu0 0
        %1264 = vmatprep.subr.bf16.mxu0 0
        %1265 = vmatpush1.bf16.xpose.msra.mxu0 0
        %1266 = vmatprep.subr.bf16.mxu0 0
        %1267 = vmatpush1.bf16.xpose.msra.mxu0 0
        %1268 = vmatprep.mubr.bf16.mxu0 0
        %1269 = vmatmul.mubr.bf16.gmra.mrb[0].mxu0 %v1231
        %v1270 = vpop.f32.mrb[0].mxu0
        %v1271 = vadd.f32 0.0, %v1270
        %v1272 = vpop.f32.mrb[0].mxu0
        %v1273 = vpop.f32.mrb[0].mxu0
        %v1274 = vpop.f32.mrb[0].mxu0
        %1275 = vdwg.mxu0
        %v1276 = vsel %vm748, %v1271, -inf
        %1277 = vmax.xlane.f32.xlu0 %v1276
        %v1278 = vpop.xlane.xlu0 %1277
        %v1279 = vsub.f32 %v1271, %v1278
        %v1280 = vmul.f32 %v1279, 1.442695
        %v1281 = vpow.pop %v1280
        %v1282 = vsel %vm748, %v1281, 0.0
        %1283 = vadd.xlane.f32.xlu0 %v1282
        %v1284 = vpop.xlane.xlu0 %1283
        %v1285 = vpack.c.bf16 %v1281, %v1281
        %1286 = vrot.lane.b32.xlu0 %v922, 104
        %v1287 = vpop.permute.xlu0 %1286
        %v1289 = vsel %vm748, %v1285, 0
        %v1292 = vsel %vm808, %v1287, 0
        %1294 = vmatprep.subr.bf16.mxu0 0
        %1295 = vmatpush1.bf16.msra.mxu0 %v1292
        %1296 = vmatprep.subr.bf16.mxu0 0
        %1297 = vmatpush1.bf16.msra.mxu0 0
        %1298 = vmatprep.subr.bf16.mxu0 0
        %1299 = vmatpush1.bf16.msra.mxu0 0
        %1300 = vmatprep.subr.bf16.mxu0 0
        %1301 = vmatpush1.bf16.msra.mxu0 0
        %1302 = vmatprep.subr.bf16.mxu0 0
        %1303 = vmatpush1.bf16.msra.mxu0 0
        %1304 = vmatprep.subr.bf16.mxu0 0
        %1305 = vmatpush1.bf16.msra.mxu0 0
        %1306 = vmatprep.subr.bf16.mxu0 0
        %1307 = vmatpush1.bf16.msra.mxu0 0
        %1308 = vmatprep.subr.bf16.mxu0 0
        %1309 = vmatpush1.bf16.msra.mxu0 0
        %1310 = vmatprep.subr.bf16.mxu0 0
        %1311 = vmatpush1.bf16.msra.mxu0 0
        %1312 = vmatprep.subr.bf16.mxu0 0
        %1313 = vmatpush1.bf16.msra.mxu0 0
        %1314 = vmatprep.subr.bf16.mxu0 0
        %1315 = vmatpush1.bf16.msra.mxu0 0
        %1316 = vmatprep.subr.bf16.mxu0 0
        %1317 = vmatpush1.bf16.msra.mxu0 0
        %1318 = vmatprep.subr.bf16.mxu0 0
        %1319 = vmatpush1.bf16.msra.mxu0 0
        %1320 = vmatprep.subr.bf16.mxu0 0
        %1321 = vmatpush1.bf16.msra.mxu0 0
        %1322 = vmatprep.subr.bf16.mxu0 0
        %1323 = vmatpush1.bf16.msra.mxu0 0
        %1324 = vmatprep.subr.bf16.mxu0 0
        %1325 = vmatpush1.bf16.msra.mxu0 0
        %1326 = vmatprep.mubr.bf16.mxu0 0
        %1327 = vmatmul.mubr.bf16.gmra.mrb[0].mxu0 %v1289
        %v1328 = vpop.f32.mrb[0].mxu0
        %v1329 = vadd.f32 0.0, %v1328
        %v1330 = vpop.f32.mrb[0].mxu0
        %v1331 = vpop.f32.mrb[0].mxu0
        %v1332 = vpop.f32.mrb[0].mxu0
        %1333 = vdwg.mxu0
        %v1334 = vrcp.pop %v1284
        %v1335 = vmul.f32 %v1329, %v1334
        %v1336 = vpack.c.bf16 %v1335, %v1335
        %v1337 = vld [vmem:[%s9 + $0xc] sm:$0xf]
        %v1339 = vsel %vm748, %v1336, 0
        %v1342 = vsel %vm808, %v1337, 0
        %1344 = vmatprep.subr.bf16.mxu0 0
        %1345 = vmatpush1.bf16.msra.mxu0 %v1342
        %1346 = vmatprep.subr.bf16.mxu0 0
        %1347 = vmatpush1.bf16.msra.mxu0 0
        %1348 = vmatprep.subr.bf16.mxu0 0
        %1349 = vmatpush1.bf16.msra.mxu0 0
        %1350 = vmatprep.subr.bf16.mxu0 0
        %1351 = vmatpush1.bf16.msra.mxu0 0
        %1352 = vmatprep.subr.bf16.mxu0 0
        %1353 = vmatpush1.bf16.msra.mxu0 0
        %1354 = vmatprep.subr.bf16.mxu0 0
        %1355 = vmatpush1.bf16.msra.mxu0 0
        %1356 = vmatprep.subr.bf16.mxu0 0
        %1357 = vmatpush1.bf16.msra.mxu0 0
        %1358 = vmatprep.subr.bf16.mxu0 0
        %1359 = vmatpush1.bf16.msra.mxu0 0
        %1360 = vmatprep.subr.bf16.mxu0 0
        %1361 = vmatpush1.bf16.msra.mxu0 0
        %1362 = vmatprep.subr.bf16.mxu0 0
        %1363 = vmatpush1.bf16.msra.mxu0 0
        %1364 = vmatprep.subr.bf16.mxu0 0
        %1365 = vmatpush1.bf16.msra.mxu0 0
        %1366 = vmatprep.subr.bf16.mxu0 0
        %1367 = vmatpush1.bf16.msra.mxu0 0
        %1368 = vmatprep.subr.bf16.mxu0 0
        %1369 = vmatpush1.bf16.msra.mxu0 0
        %1370 = vmatprep.subr.bf16.mxu0 0
        %1371 = vmatpush1.bf16.msra.mxu0 0
        %1372 = vmatprep.subr.bf16.mxu0 0
        %1373 = vmatpush1.bf16.msra.mxu0 0
        %1374 = vmatprep.subr.bf16.mxu0 0
        %1375 = vmatpush1.bf16.msra.mxu0 0
        %1376 = vmatprep.mubr.bf16.mxu0 0
        %1377 = vmatmul.mubr.bf16.gmra.mrb[0].mxu0 %v1339
        %v1378 = vpop.f32.mrb[0].mxu0
        %v1379 = vadd.f32 0.0, %v1378
        %v1380 = vpop.f32.mrb[0].mxu0
        %v1381 = vpop.f32.mrb[0].mxu0
        %v1382 = vpop.f32.mrb[0].mxu0
        %1383 = vdwg.mxu0
        %v1384 = vadd.f32 %v1225, %v1379
        %v1385 = vld [vmem:[%s10] sm:$0x1]
        %v1387 = vlaneseq
        %v1388 = vshrl.u32 %v1387, 7
        %v1389 = vsub.s32 0, %v1388
        %v1390 = vrot.slane %v1385, %v1389
        %v1392 = vadd.f32 %v1384, %v1390
        %1393 = vst [vmem:[%s531] sm:$0xff] %v1392
        %s1394 = sand.u32 %s303, 1
        %s1395 = scalar_lea.sflag [#allocation6], %s1394
        %s1396 = sand.u32 %s303, 1
        %s1397 = smul.addr %s1396, 8
        %s1398 = scalar_lea.vmem [#allocation15], %s1397
        // Predicated region
        $region93: #{tpu_custom_call.1} parent=63 // pred_check
          %p1399 = pneg %p313
        $region94: #{tpu_custom_call.1} parent=63 // pred_check_branch
          %1401 = sbr.rel (%p1399) target = $region96
        $region95: #{tpu_custom_call.1} parent=63 // pred_region
          %s1403 = ssub.s32 128, 128
          %1404 = vsyncadd %s1395, %s1403
          %s1405 = sadd.s32 %s38, %s37
          %s1406 = smul.addr %s1405, 128
          %s1407 = scalar_lea.hbm %s11, %s1406
          %s1409 = sshll.u32 %s1398, 4
          %s1410 = int_to_ptr.vmem [resolvable:$true] %s1409
          %1412 = dma.vmem_to_hbm [thread:$0]  %s1410, 128, %s1407, %s1395
        $region96: #{tpu_custom_call.1} parent=63 // pred_fallthru
          _
      $region64: #{tpu_custom_call.1} parent=5 // pred_fallthru
        _
      %p1413 = scmp.le.s32.totalorder 2, %s28
      // Predicated region
      $region97: #{tpu_custom_call.1} parent=5 // pred_check
        %p1414 = pneg %p1413
      $region98: #{tpu_custom_call.1} parent=5 // pred_check_branch
        %1416 = sbr.rel (%p1414) target = $region100
      $region99: #{tpu_custom_call.1} parent=5 // pred_region
        %s1417 = ssub.s32 %s28, 2
        // Predicated region
        $region101: #{tpu_custom_call.1} parent=99 // pred_check
          %p1418 = pneg %p319
        $region102: #{tpu_custom_call.1} parent=99 // pred_check_branch
          %1420 = sbr.rel (%p1418) target = $region104
        $region103: #{tpu_custom_call.1} parent=99 // pred_region
          %s1421 = sand.u32 %s304, 1
          %s1422 = scalar_lea.sflag [#allocation6], %s1421
          %s1423 = sand.u32 %s304, 1
          %s1424 = smul.addr %s1423, 8
          %s1425 = scalar_lea.vmem [#allocation15], %s1424
          %1426 = dma.done %s1422, 128
        $region104: #{tpu_custom_call.1} parent=99 // pred_fallthru
          _
      $region100: #{tpu_custom_call.1} parent=5 // pred_fallthru
        _
    $region6: #{tpu_custom_call.1} parent=1 // loop_footer
      %s32 = sadd.s32 1, %s28
    $region7: #{tpu_custom_call.1} parent=1 // loop_footer_branch
      %27 = sbr.rel target = $region3
    $region8: #{tpu_custom_call.1} parent=1 // loop_exit
      _
    %1427 = vsyncpa [#allocation5], 1
    %s1428 = scalar_lea.sflag [#allocation5], 1
    %1429 = vsyncpa %s1428, 1
    %1430 = vsyncpa [#allocation8], 1
    %s1431 = scalar_lea.sflag [#allocation8], 1
    %1432 = vsyncpa %s1431, 1
    %1433 = vsyncpa [#allocation11], 1
    %1434 = vsyncpa [#allocation14], 1
    %1435 = vsyncpa [#allocation6], 1
    %s1436 = scalar_lea.sflag [#allocation6], 1
    %1437 = vsyncpa %s1436, 1

</llo_original>
